<compile_context>
chip_gen: v5e
topology: v5e:2x2
jax: 0.10.0
libtpu: 0.0.40
codegen_flags: <defaults>
</compile_context>

<pallas_src>
import jax
import jax.numpy as jnp
from jax import lax
from jax.experimental import pallas as pl
from jax.experimental.pallas import tpu as pltpu


def _default_vmem_limit():
    try:
        kind = jax.devices()[0].device_kind.lower()
    except Exception:
        return 32 * 1024 * 1024
    if "v7" in kind or "7x" in kind:
        return 48 * 1024 * 1024          # 64 MiB physical per TC on v7x
    if "v5" in kind or "v6" in kind:
        return 96 * 1024 * 1024          # 128 MiB physical on v5e/v6e
    return 32 * 1024 * 1024


_VMEM_LIMIT = _default_vmem_limit()


def _full_spec(a):
    nd = a.ndim
    return pl.BlockSpec(a.shape, lambda *_: (0,) * nd)


def _pick_ca_block(n, cap=64):
    # any divisor is layout-legal here (last-two block dims are full dims);
    # prefer multiples of 8 for sublane fill.
    if n <= cap:
        return n
    for t in range(cap - cap % 8, 0, -8):
        if n % t == 0:
            return t
    for t in range(cap, 0, -1):
        if n % t == 0:
            return t
    return n


def _pick_pool_block(n, cap=128):
    # block's second-to-last dim must be a multiple of 8 or equal the full dim.
    if n <= cap:
        return n
    for t in range(cap - cap % 8, 7, -8):
        if n % t == 0:
            return t
    return n


# ----------------------------------------------------------------------------
# Pallas kernel 1: CA_LSTM attention front-end
#   trans_* linears, p·transᵀ bmm, softmax, attn·ctx bmm, map_linear + ReLU
#   (everything before the LSTM).  2-D grid: (q-block, sentence-group).
# ----------------------------------------------------------------------------
def ca_attn_kernel(p_ref, q_ref, o_ref,
                   wqo_ref, bqo_ref, wpq_ref, bpq_ref, wpo_ref, bpo_ref,
                   wmp_ref, wmqo_ref, wmpq_ref, wmpo_ref, bmap_ref,
                   out_ref):
    TB, Lp, d = p_ref.shape
    L = q_ref.shape[1]
    dout = out_ref.shape[2]
    f32 = jnp.float32
    bf16 = jnp.bfloat16

    p = p_ref[...]            # bf16 [TB, Lp, d]
    q = q_ref[...]            # bf16 [TB, L,  d]
    o = o_ref[...]            # bf16 [TB, L,  d]

    def lin(x3, w_ref, b_ref):            # shared linear on a [TB, L, d] block
        rows = x3.shape[0] * x3.shape[1]
        y = jnp.dot(x3.reshape(rows, d), w_ref[...],
                    preferred_element_type=f32) + b_ref[...]
        return y.reshape(x3.shape[0], x3.shape[1], d)

    def bmm_nt(a3, b3):                   # [TB,Lp,d] x [TB,L,d] -> [TB,Lp,L]
        return jnp.einsum('bpd,bld->bpl', a3, b3.astype(bf16),
                          preferred_element_type=f32)

    def bmm(a3, b3):                      # [TB,Lp,L] x [TB,L,d] -> [TB,Lp,d]
        return jnp.einsum('bpl,bld->bpd', a3.astype(bf16), b3,
                          preferred_element_type=f32)

    def softmax_last(x):
        m = jnp.max(x, axis=-1, keepdims=True)
        e = jnp.exp(x - m)
        return e * pl.reciprocal(jnp.sum(e, axis=-1, keepdims=True), approx=True)

    trans_qo = lin(o, wqo_ref, bqo_ref)
    attn_qo = bmm_nt(p, trans_qo)              # no softmax (matches reference)
    attn_pq_vec = bmm(softmax_last(bmm_nt(p, lin(q, wpq_ref, bpq_ref))), q)
    attn_po_vec = bmm(softmax_last(bmm_nt(p, lin(o, wpo_ref, bpo_ref))), o)

    # map_linear applied as four row-block matmuls (no lane-axis concat).
    def mlin(x3, w_ref):
        k = x3.shape[2]
        return jnp.dot(x3.reshape(TB * Lp, k).astype(bf16), w_ref[...],
                       preferred_element_type=f32)

    pre = (mlin(p, wmp_ref) + mlin(attn_qo, wmqo_ref)
           + mlin(attn_pq_vec, wmpq_ref) + mlin(attn_po_vec, wmpo_ref)
           + bmap_ref[...])
    out_ref[...] = jnp.maximum(pre, 0.0).reshape(TB, Lp, dout)


def ca_attn(p, q, o, wqo, bqo, wpq, bpq, wpo, bpo, wmap, bmap, block_cap=64):
    # p: [N, Lp, d] with N = no_sent * Bq;  q/o: [Bq, L, d]  (untiled)
    # Pairing: p[n] <-> q[n % Bq], exactly torch's q.repeat(no_sent, 1, 1).
    N, Lp, d = p.shape
    Bq, L, _ = q.shape
    assert o.shape[0] == Bq and N % Bq == 0
    dout = wmap.shape[1]
    bf16 = jnp.bfloat16

    TB = _pick_ca_block(Bq, block_cap)
    J = Bq // TB            # q-blocks (outer grid axis -> q/o resident inner)
    I = N // Bq             # sentence groups (inner grid axis)

    # host-side bf16 pre-cast of weights and resident activation blocks
    p = p.astype(bf16)
    q = q.astype(bf16)
    o = o.astype(bf16)
    wqo_b, wpq_b, wpo_b = wqo.astype(bf16), wpq.astype(bf16), wpo.astype(bf16)
    # split map_linear weight by concat blocks: [p | attn_qo | attn_pq | attn_po]
    w_p = wmap[:d].astype(bf16)
    w_qo = wmap[d:d + L].astype(bf16)
    w_pq = wmap[d + L:2 * d + L].astype(bf16)
    w_po = wmap[2 * d + L:].astype(bf16)

    return pl.pallas_call(
        ca_attn_kernel,
        out_shape=jax.ShapeDtypeStruct((N, Lp, dout), jnp.float32),
        grid=(J, I),
        in_specs=[
            pl.BlockSpec((TB, Lp, d), lambda j, i: (i * J + j, 0, 0)),
            pl.BlockSpec((TB, L, d), lambda j, i: (j, 0, 0)),   # resident over i
            pl.BlockSpec((TB, L, d), lambda j, i: (j, 0, 0)),
            _full_spec(wqo_b), _full_spec(bqo),
            _full_spec(wpq_b), _full_spec(bpq),
            _full_spec(wpo_b), _full_spec(bpo),
            _full_spec(w_p), _full_spec(w_qo), _full_spec(w_pq), _full_spec(w_po),
            _full_spec(bmap),
        ],
        out_specs=pl.BlockSpec((TB, Lp, dout), lambda j, i: (i * J + j, 0, 0)),
        compiler_params=pltpu.CompilerParams(
            dimension_semantics=("parallel", "parallel"),
            vmem_limit_bytes=_VMEM_LIMIT),
    )(p, q, o, wqo_b, bqo, wpq_b, bpq, wpo_b, bpo, w_p, w_qo, w_pq, w_po, bmap)


# ----------------------------------------------------------------------------
# Pallas kernel 2: bidirectional single-layer LSTM (PyTorch gate order i,f,g,o)
#   Both directions in one invocation (interleaved recurrences), fused-gate
#   matmuls, hoisted input projection, bf16 weights, bounded unroll.
#   Output: [T, N, 2H] with features = [forward | reverse] (torch concat order).
# ----------------------------------------------------------------------------
def bilstm_kernel(x_ref, wih_ref, whh_ref, b_ref, out_ref, zx_ref, h_ref, c_ref):
    T, N, D = x_ref.shape
    H4 = wih_ref.shape[2]
    H = H4 // 4
    bf16 = jnp.bfloat16

    # Hoisted input projection: one [T*N, D] x [D, 4H] matmul per direction.
    x2d = x_ref[...].reshape(T * N, D).astype(bf16)
    for dd in range(2):
        zx_ref[dd] = (jnp.dot(x2d, wih_ref[dd],
                              preferred_element_type=jnp.float32)
                      + b_ref[dd]).reshape(T, N, H4)

    h_ref[...] = jnp.zeros(h_ref.shape, h_ref.dtype)
    c_ref[...] = jnp.zeros(c_ref.shape, c_ref.dtype)

    def one_dir(dd, t_eff):
        h = h_ref[dd]
        z = zx_ref[dd, t_eff] + jnp.dot(h.astype(bf16), whh_ref[dd],
                                        preferred_element_type=jnp.float32)
        i_g = jax.nn.sigmoid(z[:, 0:H])
        f_g = jax.nn.sigmoid(z[:, H:2 * H])
        g_g = jnp.tanh(z[:, 2 * H:3 * H])
        o_g = jax.nn.sigmoid(z[:, 3 * H:4 * H])
        c_new = f_g * c_ref[dd] + i_g * g_g
        c_ref[dd] = c_new
        h_new = o_g * jnp.tanh(c_new)
        h_ref[dd] = h_new
        return h_new

    def step(t, carry):
        t_rev = T - 1 - t
        out_ref[t, :, 0:H] = one_dir(0, t)            # forward
        out_ref[t_rev, :, H:2 * H] = one_dir(1, t_rev)  # reverse
        return carry

    lax.fori_loop(0, T, step, 0, unroll=2)


def bilstm(x_bm, wih_f, whh_f, b_f, wih_r, whh_r, b_r, H):
    # x_bm: [N, T, D] batch-major (output of ca_attn) -> returns [T, N, 2H]
    N, T, D = x_bm.shape
    bf16 = jnp.bfloat16
    # TODO(synk): this time-major transpose could be folded into ca_attn's
    # output layout at production sizes; kept host-side for lowering simplicity.
    xt = jnp.transpose(x_bm, (1, 0, 2))                   # [T, N, D]

    wih = jnp.stack([wih_f, wih_r]).astype(bf16)          # [2, D, 4H]
    whh = jnp.stack([whh_f, whh_r]).astype(bf16)          # [2, H, 4H]
    bias = jnp.stack([b_f, b_r])                          # [2, 1, 4H] f32

    return pl.pallas_call(
        bilstm_kernel,
        out_shape=jax.ShapeDtypeStruct((T, N, 2 * H), jnp.float32),
        grid=(1,),
        in_specs=[pl.BlockSpec((T, N, D), lambda i: (0, 0, 0)),
                  pl.BlockSpec((2, D, 4 * H), lambda i: (0, 0, 0)),
                  pl.BlockSpec((2, H, 4 * H), lambda i: (0, 0, 0)),
                  pl.BlockSpec((2, 1, 4 * H), lambda i: (0, 0, 0))],
        out_specs=pl.BlockSpec((T, N, 2 * H), lambda i: (0, 0, 0)),
        scratch_shapes=[pltpu.VMEM((2, T, N, 4 * H), jnp.float32),
                        pltpu.VMEM((2, N, H), jnp.float32),
                        pltpu.VMEM((2, N, H), jnp.float32)],
        compiler_params=pltpu.CompilerParams(
            dimension_semantics=("arbitrary",), vmem_limit_bytes=_VMEM_LIMIT),
    )(xt, wih, whh, bias)


# ----------------------------------------------------------------------------
# Pallas kernel 3: ReLU(linear) -> proj -> softmax over seq -> weighted sum
#   Consumes the [T, N, 2H] LSTM output directly: ONE [T*TB, 2H] x [2H, D1]
#   matmul; projection to 1 column as a lane reduction.
# ----------------------------------------------------------------------------
def attn_pool_kernel(h_ref, w1_ref, b1_ref, wpt_ref, bp_ref, out_ref):
    T, TB, H2 = h_ref.shape
    D1 = w1_ref.shape[1]

    h2 = h_ref[...].reshape(T * TB, H2).astype(jnp.bfloat16)
    s2 = jnp.dot(h2, w1_ref[...], preferred_element_type=jnp.float32) + b1_ref[...]
    s2 = jnp.maximum(s2, 0.0)                             # ReLU(linear)
    s = s2.reshape(T, TB, D1)

    # 1-column projection as a lane reduction (VPU/XLU), not an MXU matmul.
    logit = jnp.sum(s * wpt_ref[...][None], axis=-1) + bp_ref[...]   # [T, TB]
    m = jnp.max(logit, axis=0, keepdims=True)
    e = jnp.exp(logit - m)
    a = e * pl.reciprocal(jnp.sum(e, axis=0, keepdims=True), approx=True)
    out_ref[...] = jnp.sum(s * a[:, :, None], axis=0)     # [TB, D1]


def attn_pool(h_tm, w1, b1, wp, bp, block_cap=128):
    # h_tm: [T, N, 2H] from bilstm -> returns [N, D1]
    T, N, H2 = h_tm.shape
    D1 = w1.shape[1]
    TB = _pick_pool_block(N, block_cap)
    w1b = w1.astype(jnp.bfloat16)
    wpt = wp.reshape(1, D1)

    return pl.pallas_call(
        attn_pool_kernel,
        out_shape=jax.ShapeDtypeStruct((N, D1), jnp.float32),
        grid=(N // TB,),
        in_specs=[pl.BlockSpec((T, TB, H2), lambda i: (0, i, 0)),
                  _full_spec(w1b), _full_spec(b1), _full_spec(wpt), _full_spec(bp)],
        out_specs=pl.BlockSpec((TB, D1), lambda i: (i, 0)),
        compiler_params=pltpu.CompilerParams(
            dimension_semantics=("parallel",), vmem_limit_bytes=_VMEM_LIMIT),
    )(h_tm, w1b, b1, wpt, bp)


# ----------------------------------------------------------------------------
# CA_LSTM / HCAN glue (plain JAX reshapes + kernel calls)
# ----------------------------------------------------------------------------
def ca_lstm_forward(cp, p_input, q_input, o_input):
    # p_input: [Bp, S, Lp, d];  q_input/o_input: [Bq, L, d] (untiled)
    Bp, no_sent, Lp, din = p_input.shape
    p = p_input.reshape(Bp * no_sent, Lp, din)
    pre = ca_attn(p, q_input, o_input,
                  *cp['trans_qo'], *cp['trans_pq'], *cp['trans_po'],
                  *cp['map_linear'])
    # dropout is identity in eval mode
    lstm = cp['lstm']
    return bilstm(pre, *lstm['f'], *lstm['r'], lstm['H'])     # [Lp, N, 2H]


def hcan_forward(params, no_opt,
                 p_ids, p_tt, p_mask, q_ids, q_tt, q_mask, o_ids, o_tt, o_mask,
                 labels):
    B, _, no_sent, sent_len = p_ids.shape
    d_model = params['emb'].shape[1]

    def embed(ids, tt, mask):
        # TODO(synk): surrogate for the frozen pretrained XLNet encoder
        e = params['emb'][ids] + params['type_emb'][tt]
        return e * mask[..., None].astype(jnp.float32)

    # passage: choice 0 only
    p_emb = embed(p_ids[:, 0].reshape(-1, sent_len),
                  p_tt[:, 0].reshape(-1, sent_len),
                  p_mask[:, 0].reshape(-1, sent_len))
    p_emb = p_emb.reshape(-1, no_sent, sent_len, d_model)
    p_emb = jnp.tile(p_emb, (no_opt, 1, 1, 1))   # choice replication (small; kept)

    # question: choice 0 only
    q_emb = embed(q_ids[:, 0], q_tt[:, 0], q_mask[:, 0])
    q_emb = jnp.tile(q_emb, (no_opt, 1, 1))

    # options: all choices
    o_emb = embed(o_ids.reshape(-1, sent_len),
                  o_tt.reshape(-1, sent_len),
                  o_mask.reshape(-1, sent_len))

    # sentence level
    H_sent = ca_lstm_forward(params['sent_lstm'], p_emb, q_emb, o_emb)
    sent_vec = attn_pool(H_sent, *params['sent_linear'], *params['sent_proj'])
    sent_vec = sent_vec.reshape(-1, 1, no_sent, sent_vec.shape[-1])

    # paragraph level
    H_para = ca_lstm_forward(params['para_lstm'], sent_vec, q_emb, o_emb)
    para_vec = attn_pool(H_para, *params['para_linear'], *params['para_proj'])
    para_vec = para_vec.reshape(-1, no_opt, para_vec.shape[-1])

    # final projection + cross entropy (tiny glue, plain JAX)
    wf, bf = params['final_proj']
    logits = (jnp.einsum('bcd,de->bce', para_vec, wf) + bf)[..., 0]   # [B, no_opt]

    labels_flat = labels.reshape(-1)
    logZ = jax.nn.logsumexp(logits, axis=-1)
    picked = jnp.take_along_axis(logits, labels_flat[:, None], axis=-1)[:, 0]
    loss = jnp.mean(logZ - picked)
    return loss, logits


# ----------------------------------------------------------------------------
# deterministic parameter construction
# ----------------------------------------------------------------------------
def init_params(key, d_model, d_lstm, sent_len, vocab=50, n_types=2, scale=0.1):
    keys = iter(jax.random.split(key, 64))

    def lin(fi, fo):
        W = jax.random.normal(next(keys), (fi, fo), jnp.float32) * scale
        b = jax.random.normal(next(keys), (1, fo), jnp.float32) * scale
        return (W, b)

    def lstm(D, H):
        def direction():
            wih = jax.random.normal(next(keys), (D, 4 * H), jnp.float32) * scale
            whh = jax.random.normal(next(keys), (H, 4 * H), jnp.float32) * scale
            b = jax.random.normal(next(keys), (1, 4 * H), jnp.float32) * scale
            return (wih, whh, b)     # single combined bias (= b_ih + b_hh)
        return {'f': direction(), 'r': direction(), 'H': H}

    def ca(in_dim, out_dim):
        return {'trans_pq': lin(in_dim, in_dim),
                'trans_po': lin(in_dim, in_dim),
                'trans_qo': lin(in_dim, in_dim),
                'map_linear': lin(3 * in_dim + sent_len, 4 * in_dim),
                'lstm': lstm(4 * in_dim, out_dim)}

    return {
        'emb': jax.random.normal(next(keys), (vocab, d_model), jnp.float32) * scale,
        'type_emb': jax.random.normal(next(keys), (n_types, d_model), jnp.float32) * scale,
        'sent_lstm': ca(d_model, d_lstm),
        'para_lstm': ca(2 * d_lstm, 2 * d_lstm),
        'sent_linear': lin(2 * d_lstm, 2 * d_lstm),
        'sent_proj': lin(2 * d_lstm, 1),
        'para_linear': lin(4 * d_lstm, 4 * d_lstm),
        'para_proj': lin(4 * d_lstm, 1),
        'final_proj': lin(4 * d_lstm, 1),
    }


# ----------------------------------------------------------------------------
if __name__ == "__main__":
    B, no_opt, no_sent, sent_len = 2, 3, 4, 8
    # note: the original code implicitly requires d_model == 2 * d_lstm
    d_model, d_lstm, vocab = 32, 16, 50

    key = jax.random.PRNGKey(0)
    k_par, k_p, k_q, k_o, k_pt, k_qt, k_ot, k_lbl = jax.random.split(key, 8)

    params = init_params(k_par, d_model, d_lstm, sent_len, vocab)

    p_ids = jax.random.randint(k_p, (B, no_opt, no_sent, sent_len), 0, vocab)
    q_ids = jax.random.randint(k_q, (B, no_opt, sent_len), 0, vocab)
    o_ids = jax.random.randint(k_o, (B, no_opt, sent_len), 0, vocab)
    p_tt = jax.random.randint(k_pt, p_ids.shape, 0, 2)
    q_tt = jax.random.randint(k_qt, q_ids.shape, 0, 2)
    o_tt = jax.random.randint(k_ot, o_ids.shape, 0, 2)
    p_mask = jnp.ones(p_ids.shape, jnp.float32)
    q_mask = jnp.ones(q_ids.shape, jnp.float32)
    o_mask = jnp.ones(o_ids.shape, jnp.float32)
    labels = jax.random.randint(k_lbl, (B,), 0, no_opt)

    loss, logits = hcan_forward(params, no_opt,
                                p_ids, p_tt, p_mask,
                                q_ids, q_tt, q_mask,
                                o_ids, o_tt, o_mask,
                                labels)
    jax.block_until_ready((loss, logits))
    assert logits.shape == (B, no_opt)
    print("KERNEL_OK")
</pallas_src>

<mosaic_0001>
module attributes {stable_mosaic.version = 11 : i64} {
  func.func @ca_attn_kernel(%arg0: i32, %arg1: i32, %arg2: memref<6x8x32xbf16, #tpu.memory_space<vmem>>, %arg3: memref<6x8x32xbf16, #tpu.memory_space<vmem>>, %arg4: memref<6x8x32xbf16, #tpu.memory_space<vmem>>, %arg5: memref<32x32xbf16, #tpu.memory_space<vmem>>, %arg6: memref<1x32xf32, #tpu.memory_space<vmem>>, %arg7: memref<32x32xbf16, #tpu.memory_space<vmem>>, %arg8: memref<1x32xf32, #tpu.memory_space<vmem>>, %arg9: memref<32x32xbf16, #tpu.memory_space<vmem>>, %arg10: memref<1x32xf32, #tpu.memory_space<vmem>>, %arg11: memref<32x128xbf16, #tpu.memory_space<vmem>>, %arg12: memref<8x128xbf16, #tpu.memory_space<vmem>>, %arg13: memref<32x128xbf16, #tpu.memory_space<vmem>>, %arg14: memref<32x128xbf16, #tpu.memory_space<vmem>>, %arg15: memref<1x128xf32, #tpu.memory_space<vmem>>, %arg16: memref<6x8x128xf32, #tpu.memory_space<vmem>>) attributes {dimension_semantics = [#tpu.dimension_semantics<parallel>, #tpu.dimension_semantics<parallel>], iteration_bounds = array<i64: 1, 4>, scalar_prefetch = 0 : i64, scratch_operands = 0 : i64, tpu.core_type = #tpu.core_type<tc>, window_params = [{transform_indices = @transform_0, window_bounds = array<i64: 6, 8, 32>}, {transform_indices = @transform_1, window_bounds = array<i64: 6, 8, 32>}, {transform_indices = @transform_2, window_bounds = array<i64: 6, 8, 32>}, {pipeline_mode = #tpu.pipeline_mode<synchronous>, transform_indices = @transform_3, window_bounds = array<i64: 32, 32>}, {pipeline_mode = #tpu.pipeline_mode<synchronous>, transform_indices = @transform_4, window_bounds = array<i64: 1, 32>}, {pipeline_mode = #tpu.pipeline_mode<synchronous>, transform_indices = @transform_5, window_bounds = array<i64: 32, 32>}, {pipeline_mode = #tpu.pipeline_mode<synchronous>, transform_indices = @transform_6, window_bounds = array<i64: 1, 32>}, {pipeline_mode = #tpu.pipeline_mode<synchronous>, transform_indices = @transform_7, window_bounds = array<i64: 32, 32>}, {pipeline_mode = #tpu.pipeline_mode<synchronous>, transform_indices = @transform_8, window_bounds = array<i64: 1, 32>}, {pipeline_mode = #tpu.pipeline_mode<synchronous>, transform_indices = @transform_9, window_bounds = array<i64: 32, 128>}, {pipeline_mode = #tpu.pipeline_mode<synchronous>, transform_indices = @transform_10, window_bounds = array<i64: 8, 128>}, {pipeline_mode = #tpu.pipeline_mode<synchronous>, transform_indices = @transform_11, window_bounds = array<i64: 32, 128>}, {pipeline_mode = #tpu.pipeline_mode<synchronous>, transform_indices = @transform_12, window_bounds = array<i64: 32, 128>}, {pipeline_mode = #tpu.pipeline_mode<synchronous>, transform_indices = @transform_13, window_bounds = array<i64: 1, 128>}, {transform_indices = @transform_14, window_bounds = array<i64: 6, 8, 128>}]} {
    %c0 = arith.constant 0 : index
    %c0_0 = arith.constant 0 : index
    %c0_1 = arith.constant 0 : index
    %0 = vector.load %arg2[%c0, %c0_0, %c0_1] : memref<6x8x32xbf16, #tpu.memory_space<vmem>>, vector<6x8x32xbf16>
    %c0_2 = arith.constant 0 : index
    %c0_3 = arith.constant 0 : index
    %c0_4 = arith.constant 0 : index
    %1 = vector.load %arg3[%c0_2, %c0_3, %c0_4] : memref<6x8x32xbf16, #tpu.memory_space<vmem>>, vector<6x8x32xbf16>
    %c0_5 = arith.constant 0 : index
    %c0_6 = arith.constant 0 : index
    %c0_7 = arith.constant 0 : index
    %2 = vector.load %arg4[%c0_5, %c0_6, %c0_7] : memref<6x8x32xbf16, #tpu.memory_space<vmem>>, vector<6x8x32xbf16>
    %3 = vector.shape_cast %2 : vector<6x8x32xbf16> to vector<48x32xbf16>
    %c0_8 = arith.constant 0 : index
    %c0_9 = arith.constant 0 : index
    %4 = vector.load %arg5[%c0_8, %c0_9] : memref<32x32xbf16, #tpu.memory_space<vmem>>, vector<32x32xbf16>
    %cst = arith.constant dense<0.000000e+00> : vector<48x32xf32>
    %5 = tpu.matmul %3, %4, %cst {dimension_numbers = #tpu.dot_dimension_numbers<[1], [0], [0], [1], [0, 0, 1, 1], [], []>} : vector<48x32xbf16>, vector<32x32xbf16>, vector<48x32xf32> -> vector<48x32xf32>
    %c0_10 = arith.constant 0 : index
    %c0_11 = arith.constant 0 : index
    %6 = vector.load %arg6[%c0_10, %c0_11] : memref<1x32xf32, #tpu.memory_space<vmem>>, vector<1x32xf32>
    %7 = vector.broadcast %6 : vector<1x32xf32> to vector<48x32xf32>
    %8 = arith.addf %5, %7 : vector<48x32xf32>
    %9 = vector.shape_cast %8 : vector<48x32xf32> to vector<6x8x32xf32>
    %10 = arith.truncf %9 : vector<6x8x32xf32> to vector<6x8x32xbf16>
    "tpu.trace_start"() <{level = 10 : i32, message = "bpd,bld->bpl"}> : () -> ()
    %cst_12 = arith.constant dense<0.000000e+00> : vector<6x8x8xf32>
    %11 = tpu.matmul %0, %10, %cst_12 {dimension_numbers = #tpu.dot_dimension_numbers<[2], [2], [1], [1], [0, 0, 0, 1, 1, 1], [0], [0]>} : vector<6x8x32xbf16>, vector<6x8x32xbf16>, vector<6x8x8xf32> -> vector<6x8x8xf32>
    "tpu.trace_stop"() : () -> ()
    %12 = vector.shape_cast %1 : vector<6x8x32xbf16> to vector<48x32xbf16>
    %c0_13 = arith.constant 0 : index
    %c0_14 = arith.constant 0 : index
    %13 = vector.load %arg7[%c0_13, %c0_14] : memref<32x32xbf16, #tpu.memory_space<vmem>>, vector<32x32xbf16>
    %cst_15 = arith.constant dense<0.000000e+00> : vector<48x32xf32>
    %14 = tpu.matmul %12, %13, %cst_15 {dimension_numbers = #tpu.dot_dimension_numbers<[1], [0], [0], [1], [0, 0, 1, 1], [], []>} : vector<48x32xbf16>, vector<32x32xbf16>, vector<48x32xf32> -> vector<48x32xf32>
    %c0_16 = arith.constant 0 : index
    %c0_17 = arith.constant 0 : index
    %15 = vector.load %arg8[%c0_16, %c0_17] : memref<1x32xf32, #tpu.memory_space<vmem>>, vector<1x32xf32>
    %16 = vector.broadcast %15 : vector<1x32xf32> to vector<48x32xf32>
    %17 = arith.addf %14, %16 : vector<48x32xf32>
    %18 = vector.shape_cast %17 : vector<48x32xf32> to vector<6x8x32xf32>
    %19 = arith.truncf %18 : vector<6x8x32xf32> to vector<6x8x32xbf16>
    "tpu.trace_start"() <{level = 10 : i32, message = "bpd,bld->bpl"}> : () -> ()
    %cst_18 = arith.constant dense<0.000000e+00> : vector<6x8x8xf32>
    %20 = tpu.matmul %0, %19, %cst_18 {dimension_numbers = #tpu.dot_dimension_numbers<[2], [2], [1], [1], [0, 0, 0, 1, 1, 1], [0], [0]>} : vector<6x8x32xbf16>, vector<6x8x32xbf16>, vector<6x8x8xf32> -> vector<6x8x8xf32>
    "tpu.trace_stop"() : () -> ()
    %cst_19 = arith.constant dense<0xFF800000> : vector<6x8xf32>
    %21 = vector.multi_reduction <maximumf>, %20, %cst_19 [2] : vector<6x8x8xf32> to vector<6x8xf32>
    %22 = vector.shape_cast %21 : vector<6x8xf32> to vector<6x8x1xf32>
    %23 = vector.broadcast %22 : vector<6x8x1xf32> to vector<6x8x8xf32>
    %24 = arith.subf %20, %23 : vector<6x8x8xf32>
    %25 = math.exp %24 : vector<6x8x8xf32>
    %cst_20 = arith.constant dense<0.000000e+00> : vector<6x8xf32>
    %26 = vector.multi_reduction <add>, %25, %cst_20 [2] : vector<6x8x8xf32> to vector<6x8xf32>
    %27 = vector.shape_cast %26 : vector<6x8xf32> to vector<6x8x1xf32>
    %28 = tpu.reciprocal %27 {approx = true} : vector<6x8x1xf32> -> vector<6x8x1xf32>
    %29 = vector.broadcast %28 : vector<6x8x1xf32> to vector<6x8x8xf32>
    %30 = arith.mulf %25, %29 : vector<6x8x8xf32>
    %31 = arith.truncf %30 : vector<6x8x8xf32> to vector<6x8x8xbf16>
    "tpu.trace_start"() <{level = 10 : i32, message = "bpl,bld->bpd"}> : () -> ()
    %cst_21 = arith.constant dense<0.000000e+00> : vector<6x8x32xf32>
    %32 = tpu.matmul %31, %1, %cst_21 {dimension_numbers = #tpu.dot_dimension_numbers<[2], [1], [1], [2], [0, 0, 0, 1, 1, 2], [0], [0]>} : vector<6x8x8xbf16>, vector<6x8x32xbf16>, vector<6x8x32xf32> -> vector<6x8x32xf32>
    "tpu.trace_stop"() : () -> ()
    %33 = vector.shape_cast %2 : vector<6x8x32xbf16> to vector<48x32xbf16>
    %c0_22 = arith.constant 0 : index
    %c0_23 = arith.constant 0 : index
    %34 = vector.load %arg9[%c0_22, %c0_23] : memref<32x32xbf16, #tpu.memory_space<vmem>>, vector<32x32xbf16>
    %cst_24 = arith.constant dense<0.000000e+00> : vector<48x32xf32>
    %35 = tpu.matmul %33, %34, %cst_24 {dimension_numbers = #tpu.dot_dimension_numbers<[1], [0], [0], [1], [0, 0, 1, 1], [], []>} : vector<48x32xbf16>, vector<32x32xbf16>, vector<48x32xf32> -> vector<48x32xf32>
    %c0_25 = arith.constant 0 : index
    %c0_26 = arith.constant 0 : index
    %36 = vector.load %arg10[%c0_25, %c0_26] : memref<1x32xf32, #tpu.memory_space<vmem>>, vector<1x32xf32>
    %37 = vector.broadcast %36 : vector<1x32xf32> to vector<48x32xf32>
    %38 = arith.addf %35, %37 : vector<48x32xf32>
    %39 = vector.shape_cast %38 : vector<48x32xf32> to vector<6x8x32xf32>
    %40 = arith.truncf %39 : vector<6x8x32xf32> to vector<6x8x32xbf16>
    "tpu.trace_start"() <{level = 10 : i32, message = "bpd,bld->bpl"}> : () -> ()
    %cst_27 = arith.constant dense<0.000000e+00> : vector<6x8x8xf32>
    %41 = tpu.matmul %0, %40, %cst_27 {dimension_numbers = #tpu.dot_dimension_numbers<[2], [2], [1], [1], [0, 0, 0, 1, 1, 1], [0], [0]>} : vector<6x8x32xbf16>, vector<6x8x32xbf16>, vector<6x8x8xf32> -> vector<6x8x8xf32>
    "tpu.trace_stop"() : () -> ()
    %cst_28 = arith.constant dense<0xFF800000> : vector<6x8xf32>
    %42 = vector.multi_reduction <maximumf>, %41, %cst_28 [2] : vector<6x8x8xf32> to vector<6x8xf32>
    %43 = vector.shape_cast %42 : vector<6x8xf32> to vector<6x8x1xf32>
    %44 = vector.broadcast %43 : vector<6x8x1xf32> to vector<6x8x8xf32>
    %45 = arith.subf %41, %44 : vector<6x8x8xf32>
    %46 = math.exp %45 : vector<6x8x8xf32>
    %cst_29 = arith.constant dense<0.000000e+00> : vector<6x8xf32>
    %47 = vector.multi_reduction <add>, %46, %cst_29 [2] : vector<6x8x8xf32> to vector<6x8xf32>
    %48 = vector.shape_cast %47 : vector<6x8xf32> to vector<6x8x1xf32>
    %49 = tpu.reciprocal %48 {approx = true} : vector<6x8x1xf32> -> vector<6x8x1xf32>
    %50 = vector.broadcast %49 : vector<6x8x1xf32> to vector<6x8x8xf32>
    %51 = arith.mulf %46, %50 : vector<6x8x8xf32>
    %52 = arith.truncf %51 : vector<6x8x8xf32> to vector<6x8x8xbf16>
    "tpu.trace_start"() <{level = 10 : i32, message = "bpl,bld->bpd"}> : () -> ()
    %cst_30 = arith.constant dense<0.000000e+00> : vector<6x8x32xf32>
    %53 = tpu.matmul %52, %2, %cst_30 {dimension_numbers = #tpu.dot_dimension_numbers<[2], [1], [1], [2], [0, 0, 0, 1, 1, 2], [0], [0]>} : vector<6x8x8xbf16>, vector<6x8x32xbf16>, vector<6x8x32xf32> -> vector<6x8x32xf32>
    "tpu.trace_stop"() : () -> ()
    %54 = vector.shape_cast %0 : vector<6x8x32xbf16> to vector<48x32xbf16>
    %c0_31 = arith.constant 0 : index
    %c0_32 = arith.constant 0 : index
    %55 = vector.load %arg11[%c0_31, %c0_32] : memref<32x128xbf16, #tpu.memory_space<vmem>>, vector<32x128xbf16>
    %cst_33 = arith.constant dense<0.000000e+00> : vector<48x128xf32>
    %56 = tpu.matmul %54, %55, %cst_33 {dimension_numbers = #tpu.dot_dimension_numbers<[1], [0], [0], [1], [0, 0, 1, 1], [], []>} : vector<48x32xbf16>, vector<32x128xbf16>, vector<48x128xf32> -> vector<48x128xf32>
    %57 = vector.shape_cast %11 : vector<6x8x8xf32> to vector<48x8xf32>
    %58 = arith.truncf %57 : vector<48x8xf32> to vector<48x8xbf16>
    %c0_34 = arith.constant 0 : index
    %c0_35 = arith.constant 0 : index
    %59 = vector.load %arg12[%c0_34, %c0_35] : memref<8x128xbf16, #tpu.memory_space<vmem>>, vector<8x128xbf16>
    %cst_36 = arith.constant dense<0.000000e+00> : vector<48x128xf32>
    %60 = tpu.matmul %58, %59, %cst_36 {dimension_numbers = #tpu.dot_dimension_numbers<[1], [0], [0], [1], [0, 0, 1, 1], [], []>} : vector<48x8xbf16>, vector<8x128xbf16>, vector<48x128xf32> -> vector<48x128xf32>
    %61 = arith.addf %56, %60 : vector<48x128xf32>
    %62 = vector.shape_cast %32 : vector<6x8x32xf32> to vector<48x32xf32>
    %63 = arith.truncf %62 : vector<48x32xf32> to vector<48x32xbf16>
    %c0_37 = arith.constant 0 : index
    %c0_38 = arith.constant 0 : index
    %64 = vector.load %arg13[%c0_37, %c0_38] : memref<32x128xbf16, #tpu.memory_space<vmem>>, vector<32x128xbf16>
    %cst_39 = arith.constant dense<0.000000e+00> : vector<48x128xf32>
    %65 = tpu.matmul %63, %64, %cst_39 {dimension_numbers = #tpu.dot_dimension_numbers<[1], [0], [0], [1], [0, 0, 1, 1], [], []>} : vector<48x32xbf16>, vector<32x128xbf16>, vector<48x128xf32> -> vector<48x128xf32>
    %66 = arith.addf %61, %65 : vector<48x128xf32>
    %67 = vector.shape_cast %53 : vector<6x8x32xf32> to vector<48x32xf32>
    %68 = arith.truncf %67 : vector<48x32xf32> to vector<48x32xbf16>
    %c0_40 = arith.constant 0 : index
    %c0_41 = arith.constant 0 : index
    %69 = vector.load %arg14[%c0_40, %c0_41] : memref<32x128xbf16, #tpu.memory_space<vmem>>, vector<32x128xbf16>
    %cst_42 = arith.constant dense<0.000000e+00> : vector<48x128xf32>
    %70 = tpu.matmul %68, %69, %cst_42 {dimension_numbers = #tpu.dot_dimension_numbers<[1], [0], [0], [1], [0, 0, 1, 1], [], []>} : vector<48x32xbf16>, vector<32x128xbf16>, vector<48x128xf32> -> vector<48x128xf32>
    %71 = arith.addf %66, %70 : vector<48x128xf32>
    %c0_43 = arith.constant 0 : index
    %c0_44 = arith.constant 0 : index
    %72 = vector.load %arg15[%c0_43, %c0_44] : memref<1x128xf32, #tpu.memory_space<vmem>>, vector<1x128xf32>
    %73 = vector.broadcast %72 : vector<1x128xf32> to vector<48x128xf32>
    %74 = arith.addf %71, %73 : vector<48x128xf32>
    %cst_45 = arith.constant 0.000000e+00 : f32
    %75 = vector.broadcast %cst_45 : f32 to vector<48x128xf32>
    %76 = arith.maximumf %74, %75 : vector<48x128xf32>
    %77 = vector.shape_cast %76 : vector<48x128xf32> to vector<6x8x128xf32>
    %c0_46 = arith.constant 0 : index
    %c0_47 = arith.constant 0 : index
    %c0_48 = arith.constant 0 : index
    %78 = vector.load %arg16[%c0_46, %c0_47, %c0_48] : memref<6x8x128xf32, #tpu.memory_space<vmem>>, vector<6x8x128xf32>
    tpu.vector_store %arg16[%c0_46, %c0_47, %c0_48], %77 {strides = array<i32>} : memref<6x8x128xf32, #tpu.memory_space<vmem>>, vector<6x8x128xf32>,
    return
  }
  func.func @transform_0(%arg0: i32, %arg1: i32) -> (i32, i32, i32) {
    %c1_i32 = arith.constant 1 : i32
    %0 = arith.muli %arg1, %c1_i32 : i32
    %1 = arith.addi %0, %arg0 : i32
    %c0_i32 = arith.constant 0 : i32
    %c0_i32_0 = arith.constant 0 : i32
    %c0_i32_1 = arith.constant 0 : i32
    return %1, %c0_i32, %c0_i32_0 : i32, i32, i32
  }
  func.func @transform_1(%arg0: i32, %arg1: i32) -> (i32, i32, i32) {
    %c0_i32 = arith.constant 0 : i32
    %c0_i32_0 = arith.constant 0 : i32
    %c0_i32_1 = arith.constant 0 : i32
    return %arg0, %c0_i32, %c0_i32_0 : i32, i32, i32
  }
  func.func @transform_2(%arg0: i32, %arg1: i32) -> (i32, i32, i32) {
    %c0_i32 = arith.constant 0 : i32
    %c0_i32_0 = arith.constant 0 : i32
    %c0_i32_1 = arith.constant 0 : i32
    return %arg0, %c0_i32, %c0_i32_0 : i32, i32, i32
  }
  func.func @transform_3(%arg0: i32, %arg1: i32) -> (i32, i32) {
    %c0_i32 = arith.constant 0 : i32
    %c0_i32_0 = arith.constant 0 : i32
    %c0_i32_1 = arith.constant 0 : i32
    return %c0_i32, %c0_i32_0 : i32, i32
  }
  func.func @transform_4(%arg0: i32, %arg1: i32) -> (i32, i32) {
    %c0_i32 = arith.constant 0 : i32
    %c0_i32_0 = arith.constant 0 : i32
    %c0_i32_1 = arith.constant 0 : i32
    return %c0_i32, %c0_i32_0 : i32, i32
  }
  func.func @transform_5(%arg0: i32, %arg1: i32) -> (i32, i32) {
    %c0_i32 = arith.constant 0 : i32
    %c0_i32_0 = arith.constant 0 : i32
    %c0_i32_1 = arith.constant 0 : i32
    return %c0_i32, %c0_i32_0 : i32, i32
  }
  func.func @transform_6(%arg0: i32, %arg1: i32) -> (i32, i32) {
    %c0_i32 = arith.constant 0 : i32
    %c0_i32_0 = arith.constant 0 : i32
    %c0_i32_1 = arith.constant 0 : i32
    return %c0_i32, %c0_i32_0 : i32, i32
  }
  func.func @transform_7(%arg0: i32, %arg1: i32) -> (i32, i32) {
    %c0_i32 = arith.constant 0 : i32
    %c0_i32_0 = arith.constant 0 : i32
    %c0_i32_1 = arith.constant 0 : i32
    return %c0_i32, %c0_i32_0 : i32, i32
  }
  func.func @transform_8(%arg0: i32, %arg1: i32) -> (i32, i32) {
    %c0_i32 = arith.constant 0 : i32
    %c0_i32_0 = arith.constant 0 : i32
    %c0_i32_1 = arith.constant 0 : i32
    return %c0_i32, %c0_i32_0 : i32, i32
  }
  func.func @transform_9(%arg0: i32, %arg1: i32) -> (i32, i32) {
    %c0_i32 = arith.constant 0 : i32
    %c0_i32_0 = arith.constant 0 : i32
    %c0_i32_1 = arith.constant 0 : i32
    return %c0_i32, %c0_i32_0 : i32, i32
  }
  func.func @transform_10(%arg0: i32, %arg1: i32) -> (i32, i32) {
    %c0_i32 = arith.constant 0 : i32
    %c0_i32_0 = arith.constant 0 : i32
    %c0_i32_1 = arith.constant 0 : i32
    return %c0_i32, %c0_i32_0 : i32, i32
  }
  func.func @transform_11(%arg0: i32, %arg1: i32) -> (i32, i32) {
    %c0_i32 = arith.constant 0 : i32
    %c0_i32_0 = arith.constant 0 : i32
    %c0_i32_1 = arith.constant 0 : i32
    return %c0_i32, %c0_i32_0 : i32, i32
  }
  func.func @transform_12(%arg0: i32, %arg1: i32) -> (i32, i32) {
    %c0_i32 = arith.constant 0 : i32
    %c0_i32_0 = arith.constant 0 : i32
    %c0_i32_1 = arith.constant 0 : i32
    return %c0_i32, %c0_i32_0 : i32, i32
  }
  func.func @transform_13(%arg0: i32, %arg1: i32) -> (i32, i32) {
    %c0_i32 = arith.constant 0 : i32
    %c0_i32_0 = arith.constant 0 : i32
    %c0_i32_1 = arith.constant 0 : i32
    return %c0_i32, %c0_i32_0 : i32, i32
  }
  func.func @transform_14(%arg0: i32, %arg1: i32) -> (i32, i32, i32) {
    %c1_i32 = arith.constant 1 : i32
    %0 = arith.muli %arg1, %c1_i32 : i32
    %1 = arith.addi %0, %arg0 : i32
    %c0_i32 = arith.constant 0 : i32
    %c0_i32_0 = arith.constant 0 : i32
    %c0_i32_1 = arith.constant 0 : i32
    return %1, %c0_i32, %c0_i32_0 : i32, i32, i32
  }
}

</mosaic_0001>

<llo_original>
// kernel: tpu_custom_call.1
$region0: #{tpu_custom_call.1}
  #allocation0 [shape = 'u32[]', space=smem, size = 0x4, offset = 0x4, fixed_abs, tag = 'smem constant byte address 0x4 - core index']
  #allocation1 [shape = 'u32[72,128]{1,0:T(1,128)}', space=vmem, size = 0x9000, scoped, tag = 'internal scratch']
  %s0 = inlined_call_operand.hbm [shape: bf16[24,8,32], index: 0, kind: input, shape index: {}]
  %s1 = inlined_call_operand.hbm [shape: bf16[6,8,32], index: 1, kind: input, shape index: {}]
  %s2 = inlined_call_operand.hbm [shape: bf16[6,8,32], index: 2, kind: input, shape index: {}]
  %s3 = inlined_call_operand.hbm [shape: bf16[32,32], index: 3, kind: input, shape index: {}]
  %s4 = inlined_call_operand.vmem [shape: f32[1,32], index: 4, kind: input, shape index: {}]
  %s5 = inlined_call_operand.hbm [shape: bf16[32,32], index: 5, kind: input, shape index: {}]
  %s6 = inlined_call_operand.vmem [shape: f32[1,32], index: 6, kind: input, shape index: {}]
  %s7 = inlined_call_operand.hbm [shape: bf16[32,32], index: 7, kind: input, shape index: {}]
  %s8 = inlined_call_operand.vmem [shape: f32[1,32], index: 8, kind: input, shape index: {}]
  %s9 = inlined_call_operand.hbm [shape: bf16[32,128], index: 9, kind: input, shape index: {}]
  %s10 = inlined_call_operand.vmem [shape: bf16[8,128], index: 10, kind: input, shape index: {}]
  %s11 = inlined_call_operand.hbm [shape: bf16[32,128], index: 11, kind: input, shape index: {}]
  %s12 = inlined_call_operand.hbm [shape: bf16[32,128], index: 12, kind: input, shape index: {}]
  %s13 = inlined_call_operand.vmem [shape: f32[1,128], index: 13, kind: input, shape index: {}]
  %s14 = inlined_call_operand.hbm [shape: f32[24,8,128], index: 14, kind: output, shape index: {}]
  %s15 = sld [smem:[#allocation0]]
  $region125: #{tpu_custom_call.1} parent=0
    _
  %s17 = ssub.s32 1, %s15
  %s18 = scalar_select 0, %s17, %s15
  $region1: #{tpu_custom_call.1} parent=0
    #allocation2 [shape = 'u8[24576]{0}', space=vmem, size = 0x6000, scoped, tag = 'input window, operand 0']
    #allocation3 [shape = 's32[2]{0}', space=sflag, size = 0x8, scoped, tag = 'scoped memory for tpu_custom_call.1']
    #allocation4 [shape = 's32[2]{0}', space=sflag, size = 0x8, scoped, tag = 'scoped memory for tpu_custom_call.1']
    #allocation5 [shape = 'u8[12288]{0}', space=vmem, size = 0x3000, scoped, tag = 'input window, operand 1, single buffered']
    #allocation6 [shape = 's32[1]{0}', space=sflag, size = 0x4, scoped, tag = 'scoped memory for tpu_custom_call.1']
    #allocation7 [shape = 'u8[12288]{0}', space=vmem, size = 0x3000, scoped, tag = 'input window, operand 2, single buffered']
    #allocation8 [shape = 'u8[8192]{0}', space=vmem, size = 0x2000, scoped, tag = 'input window, operand 3, single buffered']
    #allocation9 [shape = 's32[1]{0}', space=sflag, size = 0x4, scoped, tag = 'scoped memory for tpu_custom_call.1']
    #allocation10 [shape = 'u8[8192]{0}', space=vmem, size = 0x2000, scoped, tag = 'input window, operand 5, single buffered']
    #allocation11 [shape = 'u8[8192]{0}', space=vmem, size = 0x2000, scoped, tag = 'input window, operand 7, single buffered']
    #allocation12 [shape = 's32[1]{0}', space=sflag, size = 0x4, scoped, tag = 'scoped memory for tpu_custom_call.1']
    #allocation13 [shape = 'u8[8192]{0}', space=vmem, size = 0x2000, scoped, tag = 'input window, operand 9, single buffered']
    #allocation14 [shape = 'u8[8192]{0}', space=vmem, size = 0x2000, scoped, tag = 'input window, operand 11, single buffered']
    #allocation15 [shape = 's32[1]{0}', space=sflag, size = 0x4, scoped, tag = 'scoped memory for tpu_custom_call.1']
    #allocation16 [shape = 'u8[8192]{0}', space=vmem, size = 0x2000, scoped, tag = 'input window, operand 12, single buffered']
    #allocation17 [shape = 'u8[49152]{0}', space=vmem, size = 0xc000, scoped, tag = 'output window, operand 0']
    %19 = vsyncpa [#allocation3], 0
    %s20 = scalar_lea.sflag [#allocation3], 1
    %21 = vsyncpa %s20, 0
    %22 = vsyncpa [#allocation6], 0
    %23 = vsyncpa [#allocation9], 0
    %24 = vsyncpa [#allocation12], 0
    %25 = vsyncpa [#allocation15], 0
    %26 = vsyncpa [#allocation4], 0
    %s27 = scalar_lea.sflag [#allocation4], 1
    %28 = vsyncpa %s27, 0
    loop: start=0, step=1, limit=6
    $region2: #{tpu_custom_call.1} parent=1 // loop_pre_header
      _
    $region3: #{tpu_custom_call.1} parent=1 // loop_header
      %s30 = sphi 0, %s34
      %p31 = scmp.ge.s32.totalorder %s30, 6
      %s37 = sphi 0, %s49
      %s38 = sphi 0, %s45
      %s39 = sphi 0, %s37
      %s40 = sphi 0, %s38
      %s41 = sphi 0, %s39
      %s42 = sphi 0, %s40
      %s54 = sphi 0, %s56
      %s57 = sphi 0, %s54
      %s58 = sphi 0, %s57
      %s74 = sphi 0, %s58
      %s80 = sphi 0, %s82
      %s83 = sphi 0, %s80
      %s84 = sphi 0, %s83
      %s100 = sphi 0, %s84
      %s106 = sphi 0, %s108
      %s109 = sphi 0, %s106
      %s110 = sphi 0, %s109
      %s126 = sphi 0, %s110
      %s130 = sphi 0, %s130
      %s132 = sphi 0, %s130
      %s133 = sphi 0, %s132
      %s147 = sphi 0, %s133
      %s151 = sphi 0, %s151
      %s153 = sphi 0, %s151
      %s154 = sphi 0, %s153
      %s168 = sphi 0, %s154
      %s172 = sphi 0, %s172
      %s174 = sphi 0, %s172
      %s175 = sphi 0, %s174
      %s189 = sphi 0, %s175
      %s193 = sphi 0, %s193
      %s195 = sphi 0, %s193
      %s196 = sphi 0, %s195
      %s210 = sphi 0, %s196
      %s214 = sphi 0, %s214
      %s216 = sphi 0, %s214
      %s217 = sphi 0, %s216
      %s231 = sphi 0, %s217
      %s235 = sphi 0, %s235
      %s237 = sphi 0, %s235
      %s238 = sphi 0, %s237
      %s252 = sphi 0, %s238
      %s256 = sphi 0, %s256
      %s258 = sphi 0, %s256
      %s259 = sphi 0, %s258
      %s273 = sphi 0, %s259
      %s277 = sphi 0, %s277
      %s279 = sphi 0, %s277
      %s280 = sphi 0, %s279
      %s294 = sphi 0, %s280
      %s298 = sphi 0, %s298
      %s300 = sphi 0, %s298
      %s301 = sphi 0, %s300
      %s315 = sphi 0, %s301
      %s319 = sphi 0, %s319
      %s321 = sphi 0, %s319
      %s322 = sphi 0, %s321
      %s336 = sphi 0, %s322
      %s340 = sphi 0, %s340
      %s342 = sphi 0, %s340
      %s343 = sphi 0, %s342
      %s357 = sphi 0, %s343
      %s365 = sphi 0, %s367
      %s368 = sphi 0, %s365
      %s369 = sphi 0, %s368
      %s385 = sphi 0, %s369
    $region4: #{tpu_custom_call.1} parent=1 // loop_header_branch
      %33 = sbr.rel (%p31) target = $region8
    $region5: #{tpu_custom_call.1} parent=1 // loop_body
      %s35 = ssub.s32 %s30, 1
      %s36 = ssub.s32 %s30, 2
      %s43 = sadd.s32 1, %s38
      %p44 = scmp.ge.s32.totalorder %s43, 4
      %s45 = scalar_select %p44, 0, %s43
      %s46 = sadd.s32 1, %s37
      %s47 = scalar_select %p44, %s46, %s37
      %p48 = scmp.ge.s32.totalorder %s47, 1
      %s49 = scalar_select %p48, 0, %s47
      %s50 = sadd.s32 %s38, %s37
      %s51 = sadd.s32 %s45, %s49
      %s52 = ssub.s32 %s50, %s51
      %p53 = scmp.eq.s32.totalorder %s52, 0
      %s55 = sadd.s32 %s54, 1
      %s56 = scalar_select %p53, %s54, %s55
      %p59 = pneg %p53
      %p60 = scmp.eq.s32.totalorder %s30, 3
      %p61 = por %p59, %p60
      %p62 = scmp.ne.s32.totalorder %s54, %s57
      %p63 = scmp.eq.s32.totalorder %s30, 0
      %p64 = por %p62, %p63
      %p65 = scmp.ne.s32.totalorder %s54, %s57
      %p66 = scmp.eq.s32.totalorder %s35, 3
      %p67 = por %p65, %p66
      %p68 = scmp.ne.s32.totalorder %s57, %s58
      %p69 = scmp.eq.s32.totalorder %s35, 0
      %p70 = por %p68, %p69
      %p71 = scmp.ne.s32.totalorder %s57, %s58
      %p72 = scmp.eq.s32.totalorder %s36, 3
      %p73 = por %p71, %p72
      %p75 = scmp.ne.s32.totalorder %s58, %s74
      %p76 = scmp.eq.s32.totalorder %s36, 0
      %p77 = por %p75, %p76
      %s78 = ssub.s32 %s37, %s49
      %p79 = scmp.eq.s32.totalorder %s78, 0
      %s81 = sadd.s32 %s80, 1
      %s82 = scalar_select %p79, %s80, %s81
      %p85 = pneg %p79
      %p86 = scmp.eq.s32.totalorder %s30, 3
      %p87 = por %p85, %p86
      %p88 = scmp.ne.s32.totalorder %s80, %s83
      %p89 = scmp.eq.s32.totalorder %s30, 0
      %p90 = por %p88, %p89
      %p91 = scmp.ne.s32.totalorder %s80, %s83
      %p92 = scmp.eq.s32.totalorder %s35, 3
      %p93 = por %p91, %p92
      %p94 = scmp.ne.s32.totalorder %s83, %s84
      %p95 = scmp.eq.s32.totalorder %s35, 0
      %p96 = por %p94, %p95
      %p97 = scmp.ne.s32.totalorder %s83, %s84
      %p98 = scmp.eq.s32.totalorder %s36, 3
      %p99 = por %p97, %p98
      %p101 = scmp.ne.s32.totalorder %s84, %s100
      %p102 = scmp.eq.s32.totalorder %s36, 0
      %p103 = por %p101, %p102
      %s104 = ssub.s32 %s37, %s49
      %p105 = scmp.eq.s32.totalorder %s104, 0
      %s107 = sadd.s32 %s106, 1
      %s108 = scalar_select %p105, %s106, %s107
      %p111 = pneg %p105
      %p112 = scmp.eq.s32.totalorder %s30, 3
      %p113 = por %p111, %p112
      %p114 = scmp.ne.s32.totalorder %s106, %s109
      %p115 = scmp.eq.s32.totalorder %s30, 0
      %p116 = por %p114, %p115
      %p117 = scmp.ne.s32.totalorder %s106, %s109
      %p118 = scmp.eq.s32.totalorder %s35, 3
      %p119 = por %p117, %p118
      %p120 = scmp.ne.s32.totalorder %s109, %s110
      %p121 = scmp.eq.s32.totalorder %s35, 0
      %p122 = por %p120, %p121
      %p123 = scmp.ne.s32.totalorder %s109, %s110
      %p124 = scmp.eq.s32.totalorder %s36, 3
      %p125 = por %p123, %p124
      %p127 = scmp.ne.s32.totalorder %s110, %s126
      %p128 = scmp.eq.s32.totalorder %s36, 0
      %p129 = por %p127, %p128
      %s131 = sadd.s32 %s130, 1
      %p134 = scmp.eq.s32.totalorder %s30, 3
      %p135 = scmp.ne.s32.totalorder %s130, %s132
      %p136 = scmp.eq.s32.totalorder %s30, 0
      %p137 = por %p135, %p136
      %p138 = scmp.ne.s32.totalorder %s130, %s132
      %p139 = scmp.eq.s32.totalorder %s35, 3
      %p140 = por %p138, %p139
      %p141 = scmp.ne.s32.totalorder %s132, %s133
      %p142 = scmp.eq.s32.totalorder %s35, 0
      %p143 = por %p141, %p142
      %p144 = scmp.ne.s32.totalorder %s132, %s133
      %p145 = scmp.eq.s32.totalorder %s36, 3
      %p146 = por %p144, %p145
      %p148 = scmp.ne.s32.totalorder %s133, %s147
      %p149 = scmp.eq.s32.totalorder %s36, 0
      %p150 = por %p148, %p149
      %s152 = sadd.s32 %s151, 1
      %p155 = scmp.eq.s32.totalorder %s30, 3
      %p156 = scmp.ne.s32.totalorder %s151, %s153
      %p157 = scmp.eq.s32.totalorder %s30, 0
      %p158 = por %p156, %p157
      %p159 = scmp.ne.s32.totalorder %s151, %s153
      %p160 = scmp.eq.s32.totalorder %s35, 3
      %p161 = por %p159, %p160
      %p162 = scmp.ne.s32.totalorder %s153, %s154
      %p163 = scmp.eq.s32.totalorder %s35, 0
      %p164 = por %p162, %p163
      %p165 = scmp.ne.s32.totalorder %s153, %s154
      %p166 = scmp.eq.s32.totalorder %s36, 3
      %p167 = por %p165, %p166
      %p169 = scmp.ne.s32.totalorder %s154, %s168
      %p170 = scmp.eq.s32.totalorder %s36, 0
      %p171 = por %p169, %p170
      %s173 = sadd.s32 %s172, 1
      %p176 = scmp.eq.s32.totalorder %s30, 3
      %p177 = scmp.ne.s32.totalorder %s172, %s174
      %p178 = scmp.eq.s32.totalorder %s30, 0
      %p179 = por %p177, %p178
      %p180 = scmp.ne.s32.totalorder %s172, %s174
      %p181 = scmp.eq.s32.totalorder %s35, 3
      %p182 = por %p180, %p181
      %p183 = scmp.ne.s32.totalorder %s174, %s175
      %p184 = scmp.eq.s32.totalorder %s35, 0
      %p185 = por %p183, %p184
      %p186 = scmp.ne.s32.totalorder %s174, %s175
      %p187 = scmp.eq.s32.totalorder %s36, 3
      %p188 = por %p186, %p187
      %p190 = scmp.ne.s32.totalorder %s175, %s189
      %p191 = scmp.eq.s32.totalorder %s36, 0
      %p192 = por %p190, %p191
      %s194 = sadd.s32 %s193, 1
      %p197 = scmp.eq.s32.totalorder %s30, 3
      %p198 = scmp.ne.s32.totalorder %s193, %s195
      %p199 = scmp.eq.s32.totalorder %s30, 0
      %p200 = por %p198, %p199
      %p201 = scmp.ne.s32.totalorder %s193, %s195
      %p202 = scmp.eq.s32.totalorder %s35, 3
      %p203 = por %p201, %p202
      %p204 = scmp.ne.s32.totalorder %s195, %s196
      %p205 = scmp.eq.s32.totalorder %s35, 0
      %p206 = por %p204, %p205
      %p207 = scmp.ne.s32.totalorder %s195, %s196
      %p208 = scmp.eq.s32.totalorder %s36, 3
      %p209 = por %p207, %p208
      %p211 = scmp.ne.s32.totalorder %s196, %s210
      %p212 = scmp.eq.s32.totalorder %s36, 0
      %p213 = por %p211, %p212
      %s215 = sadd.s32 %s214, 1
      %p218 = scmp.eq.s32.totalorder %s30, 3
      %p219 = scmp.ne.s32.totalorder %s214, %s216
      %p220 = scmp.eq.s32.totalorder %s30, 0
      %p221 = por %p219, %p220
      %p222 = scmp.ne.s32.totalorder %s214, %s216
      %p223 = scmp.eq.s32.totalorder %s35, 3
      %p224 = por %p222, %p223
      %p225 = scmp.ne.s32.totalorder %s216, %s217
      %p226 = scmp.eq.s32.totalorder %s35, 0
      %p227 = por %p225, %p226
      %p228 = scmp.ne.s32.totalorder %s216, %s217
      %p229 = scmp.eq.s32.totalorder %s36, 3
      %p230 = por %p228, %p229
      %p232 = scmp.ne.s32.totalorder %s217, %s231
      %p233 = scmp.eq.s32.totalorder %s36, 0
      %p234 = por %p232, %p233
      %s236 = sadd.s32 %s235, 1
      %p239 = scmp.eq.s32.totalorder %s30, 3
      %p240 = scmp.ne.s32.totalorder %s235, %s237
      %p241 = scmp.eq.s32.totalorder %s30, 0
      %p242 = por %p240, %p241
      %p243 = scmp.ne.s32.totalorder %s235, %s237
      %p244 = scmp.eq.s32.totalorder %s35, 3
      %p245 = por %p243, %p244
      %p246 = scmp.ne.s32.totalorder %s237, %s238
      %p247 = scmp.eq.s32.totalorder %s35, 0
      %p248 = por %p246, %p247
      %p249 = scmp.ne.s32.totalorder %s237, %s238
      %p250 = scmp.eq.s32.totalorder %s36, 3
      %p251 = por %p249, %p250
      %p253 = scmp.ne.s32.totalorder %s238, %s252
      %p254 = scmp.eq.s32.totalorder %s36, 0
      %p255 = por %p253, %p254
      %s257 = sadd.s32 %s256, 1
      %p260 = scmp.eq.s32.totalorder %s30, 3
      %p261 = scmp.ne.s32.totalorder %s256, %s258
      %p262 = scmp.eq.s32.totalorder %s30, 0
      %p263 = por %p261, %p262
      %p264 = scmp.ne.s32.totalorder %s256, %s258
      %p265 = scmp.eq.s32.totalorder %s35, 3
      %p266 = por %p264, %p265
      %p267 = scmp.ne.s32.totalorder %s258, %s259
      %p268 = scmp.eq.s32.totalorder %s35, 0
      %p269 = por %p267, %p268
      %p270 = scmp.ne.s32.totalorder %s258, %s259
      %p271 = scmp.eq.s32.totalorder %s36, 3
      %p272 = por %p270, %p271
      %p274 = scmp.ne.s32.totalorder %s259, %s273
      %p275 = scmp.eq.s32.totalorder %s36, 0
      %p276 = por %p274, %p275
      %s278 = sadd.s32 %s277, 1
      %p281 = scmp.eq.s32.totalorder %s30, 3
      %p282 = scmp.ne.s32.totalorder %s277, %s279
      %p283 = scmp.eq.s32.totalorder %s30, 0
      %p284 = por %p282, %p283
      %p285 = scmp.ne.s32.totalorder %s277, %s279
      %p286 = scmp.eq.s32.totalorder %s35, 3
      %p287 = por %p285, %p286
      %p288 = scmp.ne.s32.totalorder %s279, %s280
      %p289 = scmp.eq.s32.totalorder %s35, 0
      %p290 = por %p288, %p289
      %p291 = scmp.ne.s32.totalorder %s279, %s280
      %p292 = scmp.eq.s32.totalorder %s36, 3
      %p293 = por %p291, %p292
      %p295 = scmp.ne.s32.totalorder %s280, %s294
      %p296 = scmp.eq.s32.totalorder %s36, 0
      %p297 = por %p295, %p296
      %s299 = sadd.s32 %s298, 1
      %p302 = scmp.eq.s32.totalorder %s30, 3
      %p303 = scmp.ne.s32.totalorder %s298, %s300
      %p304 = scmp.eq.s32.totalorder %s30, 0
      %p305 = por %p303, %p304
      %p306 = scmp.ne.s32.totalorder %s298, %s300
      %p307 = scmp.eq.s32.totalorder %s35, 3
      %p308 = por %p306, %p307
      %p309 = scmp.ne.s32.totalorder %s300, %s301
      %p310 = scmp.eq.s32.totalorder %s35, 0
      %p311 = por %p309, %p310
      %p312 = scmp.ne.s32.totalorder %s300, %s301
      %p313 = scmp.eq.s32.totalorder %s36, 3
      %p314 = por %p312, %p313
      %p316 = scmp.ne.s32.totalorder %s301, %s315
      %p317 = scmp.eq.s32.totalorder %s36, 0
      %p318 = por %p316, %p317
      %s320 = sadd.s32 %s319, 1
      %p323 = scmp.eq.s32.totalorder %s30, 3
      %p324 = scmp.ne.s32.totalorder %s319, %s321
      %p325 = scmp.eq.s32.totalorder %s30, 0
      %p326 = por %p324, %p325
      %p327 = scmp.ne.s32.totalorder %s319, %s321
      %p328 = scmp.eq.s32.totalorder %s35, 3
      %p329 = por %p327, %p328
      %p330 = scmp.ne.s32.totalorder %s321, %s322
      %p331 = scmp.eq.s32.totalorder %s35, 0
      %p332 = por %p330, %p331
      %p333 = scmp.ne.s32.totalorder %s321, %s322
      %p334 = scmp.eq.s32.totalorder %s36, 3
      %p335 = por %p333, %p334
      %p337 = scmp.ne.s32.totalorder %s322, %s336
      %p338 = scmp.eq.s32.totalorder %s36, 0
      %p339 = por %p337, %p338
      %s341 = sadd.s32 %s340, 1
      %p344 = scmp.eq.s32.totalorder %s30, 3
      %p345 = scmp.ne.s32.totalorder %s340, %s342
      %p346 = scmp.eq.s32.totalorder %s30, 0
      %p347 = por %p345, %p346
      %p348 = scmp.ne.s32.totalorder %s340, %s342
      %p349 = scmp.eq.s32.totalorder %s35, 3
      %p350 = por %p348, %p349
      %p351 = scmp.ne.s32.totalorder %s342, %s343
      %p352 = scmp.eq.s32.totalorder %s35, 0
      %p353 = por %p351, %p352
      %p354 = scmp.ne.s32.totalorder %s342, %s343
      %p355 = scmp.eq.s32.totalorder %s36, 3
      %p356 = por %p354, %p355
      %p358 = scmp.ne.s32.totalorder %s343, %s357
      %p359 = scmp.eq.s32.totalorder %s36, 0
      %p360 = por %p358, %p359
      %s361 = sadd.s32 %s38, %s37
      %s362 = sadd.s32 %s45, %s49
      %s363 = ssub.s32 %s361, %s362
      %p364 = scmp.eq.s32.totalorder %s363, 0
      %s366 = sadd.s32 %s365, 1
      %s367 = scalar_select %p364, %s365, %s366
      %p370 = pneg %p364
      %p371 = scmp.eq.s32.totalorder %s30, 3
      %p372 = por %p370, %p371
      %p373 = scmp.ne.s32.totalorder %s365, %s368
      %p374 = scmp.eq.s32.totalorder %s30, 0
      %p375 = por %p373, %p374
      %p376 = scmp.ne.s32.totalorder %s365, %s368
      %p377 = scmp.eq.s32.totalorder %s35, 3
      %p378 = por %p376, %p377
      %p379 = scmp.ne.s32.totalorder %s368, %s369
      %p380 = scmp.eq.s32.totalorder %s35, 0
      %p381 = por %p379, %p380
      %p382 = scmp.ne.s32.totalorder %s368, %s369
      %p383 = scmp.eq.s32.totalorder %s36, 3
      %p384 = por %p382, %p383
      %p386 = scmp.ne.s32.totalorder %s369, %s385
      %p387 = scmp.eq.s32.totalorder %s36, 0
      %p388 = por %p386, %p387
      %p389 = scmp.le.s32.totalorder 1, %s30
      %p390 = scmp.lt.s32.totalorder %s30, 5
      %p391 = pnand %p389, %p390
      %p392 = pneg %p391
      // Predicated region
      $region9: #{tpu_custom_call.1} parent=5 // pred_check
        _
      $region10: #{tpu_custom_call.1} parent=5 // pred_check_branch
        %394 = sbr.rel (%p391) target = $region12
      $region11: #{tpu_custom_call.1} parent=5 // pred_region
        %s395 = ssub.s32 %s30, 1
        // Predicated region
        $region13: #{tpu_custom_call.1} parent=11 // pred_check
          %p396 = pneg %p96
        $region14: #{tpu_custom_call.1} parent=11 // pred_check_branch
          %398 = sbr.rel (%p396) target = $region16
        $region15: #{tpu_custom_call.1} parent=11 // pred_region
          %s399 = smul.u32 6, %s39
          %401 = vsyncadd [#allocation6], 0
          %s402 = smul.addr %s399, 4
          %s403 = scalar_lea.hbm %s1, %s402
          %s404 = sshll.u32 %s403, 4
          %s405 = int_to_ptr.hbm [resolvable:$true] %s404
          %s406 = sshll.u32 [#allocation5], 4
          %s407 = int_to_ptr.vmem [resolvable:$true] %s406
          %412 = dma.hbm_to_vmem [thread:$0]  %s405, 384, %s407, [#allocation6], 64, 64, 4
        $region16: #{tpu_custom_call.1} parent=11 // pred_fallthru
          _
        // Predicated region
        $region17: #{tpu_custom_call.1} parent=11 // pred_check
          %p413 = pneg %p122
        $region18: #{tpu_custom_call.1} parent=11 // pred_check_branch
          %415 = sbr.rel (%p413) target = $region20
        $region19: #{tpu_custom_call.1} parent=11 // pred_region
          %s416 = smul.u32 6, %s39
          %418 = vsyncadd [#allocation6], 0
          %s419 = smul.addr %s416, 4
          %s420 = scalar_lea.hbm %s2, %s419
          %s421 = sshll.u32 %s420, 4
          %s422 = int_to_ptr.hbm [resolvable:$true] %s421
          %s423 = sshll.u32 [#allocation7], 4
          %s424 = int_to_ptr.vmem [resolvable:$true] %s423
          %429 = dma.hbm_to_vmem [thread:$0]  %s422, 384, %s424, [#allocation6], 64, 64, 4
        $region20: #{tpu_custom_call.1} parent=11 // pred_fallthru
          _
        // Predicated region
        $region21: #{tpu_custom_call.1} parent=11 // pred_check
          %p430 = pneg %p143
        $region22: #{tpu_custom_call.1} parent=11 // pred_check_branch
          %432 = sbr.rel (%p430) target = $region24
        $region23: #{tpu_custom_call.1} parent=11 // pred_region
          %434 = vsyncadd [#allocation9], 0
          %s435 = sshll.u32 %s3, 4
          %s436 = int_to_ptr.hbm [resolvable:$true] %s435
          %s437 = sshll.u32 [#allocation8], 4
          %s438 = int_to_ptr.vmem [resolvable:$true] %s437
          %443 = dma.hbm_to_vmem [thread:$0]  %s436, 256, %s438, [#allocation9], 64, 64, 4
        $region24: #{tpu_custom_call.1} parent=11 // pred_fallthru
          _
        // Predicated region
        $region25: #{tpu_custom_call.1} parent=11 // pred_check
          %p444 = pneg %p164
        $region26: #{tpu_custom_call.1} parent=11 // pred_check_branch
          %446 = sbr.rel (%p444) target = $region28
        $region27: #{tpu_custom_call.1} parent=11 // pred_region
          _
        $region28: #{tpu_custom_call.1} parent=11 // pred_fallthru
          _
        // Predicated region
        $region29: #{tpu_custom_call.1} parent=11 // pred_check
          %p447 = pneg %p185
        $region30: #{tpu_custom_call.1} parent=11 // pred_check_branch
          %449 = sbr.rel (%p447) target = $region32
        $region31: #{tpu_custom_call.1} parent=11 // pred_region
          %451 = vsyncadd [#allocation9], 0
          %s452 = sshll.u32 %s5, 4
          %s453 = int_to_ptr.hbm [resolvable:$true] %s452
          %s454 = sshll.u32 [#allocation10], 4
          %s455 = int_to_ptr.vmem [resolvable:$true] %s454
          %460 = dma.hbm_to_vmem [thread:$0]  %s453, 256, %s455, [#allocation9], 64, 64, 4
        $region32: #{tpu_custom_call.1} parent=11 // pred_fallthru
          _
        // Predicated region
        $region33: #{tpu_custom_call.1} parent=11 // pred_check
          %p461 = pneg %p206
        $region34: #{tpu_custom_call.1} parent=11 // pred_check_branch
          %463 = sbr.rel (%p461) target = $region36
        $region35: #{tpu_custom_call.1} parent=11 // pred_region
          _
        $region36: #{tpu_custom_call.1} parent=11 // pred_fallthru
          _
        // Predicated region
        $region37: #{tpu_custom_call.1} parent=11 // pred_check
          %p464 = pneg %p227
        $region38: #{tpu_custom_call.1} parent=11 // pred_check_branch
          %466 = sbr.rel (%p464) target = $region40
        $region39: #{tpu_custom_call.1} parent=11 // pred_region
          %468 = vsyncadd [#allocation12], 0
          %s469 = sshll.u32 %s7, 4
          %s470 = int_to_ptr.hbm [resolvable:$true] %s469
          %s471 = sshll.u32 [#allocation11], 4
          %s472 = int_to_ptr.vmem [resolvable:$true] %s471
          %477 = dma.hbm_to_vmem [thread:$0]  %s470, 256, %s472, [#allocation12], 64, 64, 4
        $region40: #{tpu_custom_call.1} parent=11 // pred_fallthru
          _
        // Predicated region
        $region41: #{tpu_custom_call.1} parent=11 // pred_check
          %p478 = pneg %p248
        $region42: #{tpu_custom_call.1} parent=11 // pred_check_branch
          %480 = sbr.rel (%p478) target = $region44
        $region43: #{tpu_custom_call.1} parent=11 // pred_region
          _
        $region44: #{tpu_custom_call.1} parent=11 // pred_fallthru
          _
        // Predicated region
        $region45: #{tpu_custom_call.1} parent=11 // pred_check
          %p481 = pneg %p269
        $region46: #{tpu_custom_call.1} parent=11 // pred_check_branch
          %483 = sbr.rel (%p481) target = $region48
        $region47: #{tpu_custom_call.1} parent=11 // pred_region
          %485 = vsyncadd [#allocation12], 0
          %s486 = sshll.u32 %s9, 4
          %s487 = int_to_ptr.hbm [resolvable:$true] %s486
          %s488 = sshll.u32 [#allocation13], 4
          %s489 = int_to_ptr.vmem [resolvable:$true] %s488
          %494 = dma.hbm_to_vmem [thread:$0]  %s487, 256, %s489, [#allocation12], 64, 64, 4
        $region48: #{tpu_custom_call.1} parent=11 // pred_fallthru
          _
        // Predicated region
        $region49: #{tpu_custom_call.1} parent=11 // pred_check
          %p495 = pneg %p290
        $region50: #{tpu_custom_call.1} parent=11 // pred_check_branch
          %497 = sbr.rel (%p495) target = $region52
        $region51: #{tpu_custom_call.1} parent=11 // pred_region
          _
        $region52: #{tpu_custom_call.1} parent=11 // pred_fallthru
          _
        // Predicated region
        $region53: #{tpu_custom_call.1} parent=11 // pred_check
          %p498 = pneg %p311
        $region54: #{tpu_custom_call.1} parent=11 // pred_check_branch
          %500 = sbr.rel (%p498) target = $region56
        $region55: #{tpu_custom_call.1} parent=11 // pred_region
          %502 = vsyncadd [#allocation15], 0
          %s503 = sshll.u32 %s11, 4
          %s504 = int_to_ptr.hbm [resolvable:$true] %s503
          %s505 = sshll.u32 [#allocation14], 4
          %s506 = int_to_ptr.vmem [resolvable:$true] %s505
          %511 = dma.hbm_to_vmem [thread:$0]  %s504, 256, %s506, [#allocation15], 64, 64, 4
        $region56: #{tpu_custom_call.1} parent=11 // pred_fallthru
          _
        // Predicated region
        $region57: #{tpu_custom_call.1} parent=11 // pred_check
          %p512 = pneg %p332
        $region58: #{tpu_custom_call.1} parent=11 // pred_check_branch
          %514 = sbr.rel (%p512) target = $region60
        $region59: #{tpu_custom_call.1} parent=11 // pred_region
          %516 = vsyncadd [#allocation15], 0
          %s517 = sshll.u32 %s12, 4
          %s518 = int_to_ptr.hbm [resolvable:$true] %s517
          %s519 = sshll.u32 [#allocation16], 4
          %s520 = int_to_ptr.vmem [resolvable:$true] %s519
          %525 = dma.hbm_to_vmem [thread:$0]  %s518, 256, %s520, [#allocation15], 64, 64, 4
        $region60: #{tpu_custom_call.1} parent=11 // pred_fallthru
          _
        // Predicated region
        $region61: #{tpu_custom_call.1} parent=11 // pred_check
          %p526 = pneg %p353
        $region62: #{tpu_custom_call.1} parent=11 // pred_check_branch
          %528 = sbr.rel (%p526) target = $region64
        $region63: #{tpu_custom_call.1} parent=11 // pred_region
          _
        $region64: #{tpu_custom_call.1} parent=11 // pred_fallthru
          _
      $region12: #{tpu_custom_call.1} parent=5 // pred_fallthru
        _
      %p529 = scmp.lt.s32.totalorder %s30, 4
      // Predicated region
      $region65: #{tpu_custom_call.1} parent=5 // pred_check
        %p530 = pneg %p529
      $region66: #{tpu_custom_call.1} parent=5 // pred_check_branch
        %532 = sbr.rel (%p530) target = $region68
      $region67: #{tpu_custom_call.1} parent=5 // pred_region
        // Predicated region
        $region69: #{tpu_custom_call.1} parent=67 // pred_check
          %p533 = pneg %p64
        $region70: #{tpu_custom_call.1} parent=67 // pred_check_branch
          %535 = sbr.rel (%p533) target = $region72
        $region71: #{tpu_custom_call.1} parent=67 // pred_region
          %s536 = sand.u32 %s54, 1
          %s537 = scalar_lea.sflag [#allocation3], %s536
          %s538 = sand.u32 %s54, 1
          %s539 = smul.addr %s538, 24
          %s540 = scalar_lea.vmem [#allocation2], %s539
          %s541 = sadd.s32 %s38, %s37
          %s542 = smul.u32 6, %s541
          %544 = vsyncadd %s537, 0
          %s545 = smul.addr %s542, 4
          %s546 = scalar_lea.hbm %s0, %s545
          %s547 = sshll.u32 %s546, 4
          %s548 = int_to_ptr.hbm [resolvable:$true] %s547
          %s549 = sshll.u32 %s540, 4
          %s550 = int_to_ptr.vmem [resolvable:$true] %s549
          %555 = dma.hbm_to_vmem [thread:$0]  %s548, 384, %s550, %s537, 64, 64, 4
        $region72: #{tpu_custom_call.1} parent=67 // pred_fallthru
          _
      $region68: #{tpu_custom_call.1} parent=5 // pred_fallthru
        _
      %p556 = scmp.le.s32.totalorder 1, %s30
      %p557 = scmp.lt.s32.totalorder %s30, 5
      %p558 = pnand %p556, %p557
      %p559 = pneg %p558
      // Predicated region
      $region73: #{tpu_custom_call.1} parent=5 // pred_check
        _
      $region74: #{tpu_custom_call.1} parent=5 // pred_check_branch
        %561 = sbr.rel (%p558) target = $region76
      $region75: #{tpu_custom_call.1} parent=5 // pred_region
        %s562 = ssub.s32 %s30, 1
        %s563 = sand.u32 %s57, 1
        %s564 = scalar_lea.sflag [#allocation3], %s563
        %s565 = sand.u32 %s57, 1
        %s566 = smul.addr %s565, 24
        %s567 = scalar_lea.vmem [#allocation2], %s566
        // Predicated region
        $region77: #{tpu_custom_call.1} parent=75 // pred_check
          %p568 = pneg %p70
        $region78: #{tpu_custom_call.1} parent=75 // pred_check_branch
          %570 = sbr.rel (%p568) target = $region80
        $region79: #{tpu_custom_call.1} parent=75 // pred_region
          %572 = dma.done %s564, 384
        $region80: #{tpu_custom_call.1} parent=75 // pred_fallthru
          _
        // Predicated region
        $region81: #{tpu_custom_call.1} parent=75 // pred_check
          %p573 = pneg %p96
        $region82: #{tpu_custom_call.1} parent=75 // pred_check_branch
          %575 = sbr.rel (%p573) target = $region84
        $region83: #{tpu_custom_call.1} parent=75 // pred_region
          %577 = dma.done [#allocation6], 384
        $region84: #{tpu_custom_call.1} parent=75 // pred_fallthru
          _
        // Predicated region
        $region85: #{tpu_custom_call.1} parent=75 // pred_check
          %p578 = pneg %p122
        $region86: #{tpu_custom_call.1} parent=75 // pred_check_branch
          %580 = sbr.rel (%p578) target = $region88
        $region87: #{tpu_custom_call.1} parent=75 // pred_region
          %582 = dma.done [#allocation6], 384
        $region88: #{tpu_custom_call.1} parent=75 // pred_fallthru
          _
        // Predicated region
        $region89: #{tpu_custom_call.1} parent=75 // pred_check
          %p583 = pneg %p143
        $region90: #{tpu_custom_call.1} parent=75 // pred_check_branch
          %585 = sbr.rel (%p583) target = $region92
        $region91: #{tpu_custom_call.1} parent=75 // pred_region
          %587 = dma.done [#allocation9], 256
        $region92: #{tpu_custom_call.1} parent=75 // pred_fallthru
          _
        // Predicated region
        $region93: #{tpu_custom_call.1} parent=75 // pred_check
          %p588 = pneg %p185
        $region94: #{tpu_custom_call.1} parent=75 // pred_check_branch
          %590 = sbr.rel (%p588) target = $region96
        $region95: #{tpu_custom_call.1} parent=75 // pred_region
          %592 = dma.done [#allocation9], 256
        $region96: #{tpu_custom_call.1} parent=75 // pred_fallthru
          _
        // Predicated region
        $region97: #{tpu_custom_call.1} parent=75 // pred_check
          %p593 = pneg %p227
        $region98: #{tpu_custom_call.1} parent=75 // pred_check_branch
          %595 = sbr.rel (%p593) target = $region100
        $region99: #{tpu_custom_call.1} parent=75 // pred_region
          %597 = dma.done [#allocation12], 256
        $region100: #{tpu_custom_call.1} parent=75 // pred_fallthru
          _
        // Predicated region
        $region101: #{tpu_custom_call.1} parent=75 // pred_check
          %p598 = pneg %p269
        $region102: #{tpu_custom_call.1} parent=75 // pred_check_branch
          %600 = sbr.rel (%p598) target = $region104
        $region103: #{tpu_custom_call.1} parent=75 // pred_region
          %602 = dma.done [#allocation12], 256
        $region104: #{tpu_custom_call.1} parent=75 // pred_fallthru
          _
        // Predicated region
        $region105: #{tpu_custom_call.1} parent=75 // pred_check
          %p603 = pneg %p311
        $region106: #{tpu_custom_call.1} parent=75 // pred_check_branch
          %605 = sbr.rel (%p603) target = $region108
        $region107: #{tpu_custom_call.1} parent=75 // pred_region
          %607 = dma.done [#allocation15], 256
        $region108: #{tpu_custom_call.1} parent=75 // pred_fallthru
          _
        // Predicated region
        $region109: #{tpu_custom_call.1} parent=75 // pred_check
          %p608 = pneg %p332
        $region110: #{tpu_custom_call.1} parent=75 // pred_check_branch
          %610 = sbr.rel (%p608) target = $region112
        $region111: #{tpu_custom_call.1} parent=75 // pred_region
          %612 = dma.done [#allocation15], 256
        $region112: #{tpu_custom_call.1} parent=75 // pred_fallthru
          _
        %s613 = sand.u32 %s57, 1
        %s614 = scalar_lea.sflag [#allocation3], %s613
        %s615 = sand.u32 %s57, 1
        %s616 = smul.addr %s615, 24
        %s617 = scalar_lea.vmem [#allocation2], %s616
        %p618 = pneg %p70
        %p619 = pneg %p67
        %p620 = pneg %p96
        %p621 = pneg %p93
        %p622 = pneg %p122
        %p623 = pneg %p119
        %p624 = pneg %p143
        %p625 = pneg %p140
        %p626 = pneg %p164
        %p627 = pneg %p161
        %p628 = pneg %p185
        %p629 = pneg %p182
        %p630 = pneg %p206
        %p631 = pneg %p203
        %p632 = pneg %p227
        %p633 = pneg %p224
        %p634 = pneg %p248
        %p635 = pneg %p245
        %p636 = pneg %p269
        %p637 = pneg %p266
        %p638 = pneg %p290
        %p639 = pneg %p287
        %p640 = pneg %p311
        %p641 = pneg %p308
        %p642 = pneg %p332
        %p643 = pneg %p329
        %p644 = pneg %p353
        %p645 = pneg %p350
        %p646 = pneg %p381
        %p647 = pneg %p378
        %s648 = sand.u32 %s368, 1
        %s649 = scalar_lea.sflag [#allocation4], %s648
        %s650 = sand.u32 %s368, 1
        %s651 = smul.addr %s650, 48
        %s652 = scalar_lea.vmem [#allocation17], %s651
        %s653 = sadd.s32 %s40, %s39
        %s654 = smul.u32 6, %s653
        %s655 = smul.u32 6, %s39
        %s656 = smul.u32 6, %s39
        %s657 = sadd.s32 %s40, %s39
        %s658 = smul.u32 6, %s657
        %v660 = vld [vmem:[%s567] sm:$0xf]
        %v661 = vld [vmem:[%s567 + $0x4] sm:$0xf]
        %v662 = vld [vmem:[%s567 + $0x8] sm:$0xf]
        %v663 = vld [vmem:[%s567 + $0xc] sm:$0xf]
        %v664 = vld [vmem:[%s567 + $0x10] sm:$0xf]
        %v665 = vld [vmem:[%s567 + $0x14] sm:$0xf]
        %v666 = vld [vmem:[#allocation5] sm:$0xf]
        %v667 = vld [vmem:[#allocation5 + $0x4] sm:$0xf]
        %v668 = vld [vmem:[#allocation5 + $0x8] sm:$0xf]
        %v669 = vld [vmem:[#allocation5 + $0xc] sm:$0xf]
        %v670 = vld [vmem:[#allocation5 + $0x10] sm:$0xf]
        %v671 = vld [vmem:[#allocation5 + $0x14] sm:$0xf]
        %v672 = vld [vmem:[#allocation7] sm:$0xf]
        %v673 = vld [vmem:[#allocation7 + $0x4] sm:$0xf]
        %v674 = vld [vmem:[#allocation7 + $0x8] sm:$0xf]
        %v675 = vld [vmem:[#allocation7 + $0xc] sm:$0xf]
        %v676 = vld [vmem:[#allocation7 + $0x10] sm:$0xf]
        %v677 = vld [vmem:[#allocation7 + $0x14] sm:$0xf]
        %v678 = vld [vmem:[#allocation8] sm:$0xf]
        %v679 = vld [vmem:[#allocation8 + $0x4] sm:$0xf]
        %v680 = vld [vmem:[#allocation8 + $0x8] sm:$0xf]
        %v681 = vld [vmem:[#allocation8 + $0xc] sm:$0xf]
        %v682 = vld [vmem:[%s4] sm:$0x1]
        %v684 = vperm.slane %v682, 0
        %v692 = vunpack.c.l.b16 %v672
        %v693 = vunpack.c.l.b16 %v673
        %v694 = vunpack.c.l.b16 %v674
        %v695 = vunpack.c.l.b16 %v675
        %v696 = vunpack.c.l.b16 %v676
        %v697 = vunpack.c.l.b16 %v677
        %v698 = vpack.c.b16 %v693, %v692
        %v699 = vpack.c.b16 %v695, %v694
        %v700 = vpack.c.b16 %v697, %v696
        %v705 = vunpack.c.l.b16 %v678
        %v706 = vunpack.c.l.b16 %v679
        %v707 = vunpack.c.l.b16 %v680
        %v708 = vunpack.c.l.b16 %v681
        %v709 = vpack.c.b16 %v706, %v705
        %v710 = vpack.c.b16 %v708, %v707
        %vm713 = vcmask 261120
        %v715 = vsel %vm713, %v698, 0
        %v718 = vsel %vm713, %v699, 0
        %v721 = vsel %vm713, %v700, 0
        %723 = vmatpush.bf16.msra.mxu0 0
        %724 = vmatpush.bf16.msra.mxu0 0
        %725 = vmatpush.bf16.msra.mxu0 0
        %726 = vmatpush.bf16.msra.mxu0 0
        %727 = vmatpush.bf16.msra.mxu0 0
        %728 = vmatpush.bf16.msra.mxu0 0
        %729 = vmatpush.bf16.msra.mxu0 %v710
        %730 = vmatpush.bf16.msra.mxu0 %v709
        %731 = vmatmul.bf16.gmra.mxu0 %v715
        %v732 = vpop.f32.mrf.mxu0
        %v733 = vadd.f32 %v684, %v732
        %v734 = vpop.f32.mrf.mxu0
        %v735 = vadd.f32 %v684, %v734
        %736 = vmatmul.bf16.gmra.mxu0 %v718
        %v737 = vpop.f32.mrf.mxu0
        %v738 = vadd.f32 %v684, %v737
        %v739 = vpop.f32.mrf.mxu0
        %v740 = vadd.f32 %v684, %v739
        %741 = vmatmul.bf16.gmra.mxu0 %v721
        %v742 = vpop.f32.mrf.mxu0
        %v743 = vadd.f32 %v684, %v742
        %v744 = vpop.f32.mrf.mxu0
        %v745 = vadd.f32 %v684, %v744
        %746 = vdwg.mxu0
        %v747 = vpack.c.bf16 %v733, %v733
        %v748 = vpack.c.bf16 %v735, %v735
        %v749 = vpack.c.bf16 %v738, %v738
        %v750 = vpack.c.bf16 %v740, %v740
        %v751 = vpack.c.bf16 %v743, %v743
        %v752 = vpack.c.bf16 %v745, %v745
        %v754 = vsel %vm713, %v660, 0
        %v757 = vsel %vm713, %v747, 0
        %759 = vmatpush.bf16.xpose.msra.mxu0 0
        %760 = vmatpush.bf16.xpose.msra.mxu0 0
        %761 = vmatpush.bf16.xpose.msra.mxu0 0
        %762 = vmatpush.bf16.xpose.msra.mxu0 0
        %763 = vmatpush.bf16.xpose.msra.mxu0 0
        %764 = vmatpush.bf16.xpose.msra.mxu0 0
        %765 = vmatpush.bf16.xpose.msra.mxu0 0
        %766 = vmatpush.bf16.xpose.msra.mxu0 %v757
        %767 = vmatmul.bf16.gmra.mxu0 %v754
        %v768 = vpop.f32.mrf.mxu0
        %v769 = vadd.f32 0.0, %v768
        %v770 = vpop.f32.mrf.mxu0
        %771 = vdwg.mxu0
        %v773 = vsel %vm713, %v661, 0
        %v776 = vsel %vm713, %v748, 0
        %778 = vmatpush.bf16.xpose.msra.mxu0 0
        %779 = vmatpush.bf16.xpose.msra.mxu0 0
        %780 = vmatpush.bf16.xpose.msra.mxu0 0
        %781 = vmatpush.bf16.xpose.msra.mxu0 0
        %782 = vmatpush.bf16.xpose.msra.mxu0 0
        %783 = vmatpush.bf16.xpose.msra.mxu0 0
        %784 = vmatpush.bf16.xpose.msra.mxu0 0
        %785 = vmatpush.bf16.xpose.msra.mxu0 %v776
        %786 = vmatmul.bf16.gmra.mxu0 %v773
        %v787 = vpop.f32.mrf.mxu0
        %v788 = vadd.f32 0.0, %v787
        %v789 = vpop.f32.mrf.mxu0
        %790 = vdwg.mxu0
        %v792 = vsel %vm713, %v662, 0
        %v795 = vsel %vm713, %v749, 0
        %797 = vmatpush.bf16.xpose.msra.mxu0 0
        %798 = vmatpush.bf16.xpose.msra.mxu0 0
        %799 = vmatpush.bf16.xpose.msra.mxu0 0
        %800 = vmatpush.bf16.xpose.msra.mxu0 0
        %801 = vmatpush.bf16.xpose.msra.mxu0 0
        %802 = vmatpush.bf16.xpose.msra.mxu0 0
        %803 = vmatpush.bf16.xpose.msra.mxu0 0
        %804 = vmatpush.bf16.xpose.msra.mxu0 %v795
        %805 = vmatmul.bf16.gmra.mxu0 %v792
        %v806 = vpop.f32.mrf.mxu0
        %v807 = vadd.f32 0.0, %v806
        %v808 = vpop.f32.mrf.mxu0
        %809 = vdwg.mxu0
        %v811 = vsel %vm713, %v663, 0
        %v814 = vsel %vm713, %v750, 0
        %816 = vmatpush.bf16.xpose.msra.mxu0 0
        %817 = vmatpush.bf16.xpose.msra.mxu0 0
        %818 = vmatpush.bf16.xpose.msra.mxu0 0
        %819 = vmatpush.bf16.xpose.msra.mxu0 0
        %820 = vmatpush.bf16.xpose.msra.mxu0 0
        %821 = vmatpush.bf16.xpose.msra.mxu0 0
        %822 = vmatpush.bf16.xpose.msra.mxu0 0
        %823 = vmatpush.bf16.xpose.msra.mxu0 %v814
        %824 = vmatmul.bf16.gmra.mxu0 %v811
        %v825 = vpop.f32.mrf.mxu0
        %v826 = vadd.f32 0.0, %v825
        %v827 = vpop.f32.mrf.mxu0
        %828 = vdwg.mxu0
        %v830 = vsel %vm713, %v664, 0
        %v833 = vsel %vm713, %v751, 0
        %835 = vmatpush.bf16.xpose.msra.mxu0 0
        %836 = vmatpush.bf16.xpose.msra.mxu0 0
        %837 = vmatpush.bf16.xpose.msra.mxu0 0
        %838 = vmatpush.bf16.xpose.msra.mxu0 0
        %839 = vmatpush.bf16.xpose.msra.mxu0 0
        %840 = vmatpush.bf16.xpose.msra.mxu0 0
        %841 = vmatpush.bf16.xpose.msra.mxu0 0
        %842 = vmatpush.bf16.xpose.msra.mxu0 %v833
        %843 = vmatmul.bf16.gmra.mxu0 %v830
        %v844 = vpop.f32.mrf.mxu0
        %v845 = vadd.f32 0.0, %v844
        %v846 = vpop.f32.mrf.mxu0
        %847 = vdwg.mxu0
        %v849 = vsel %vm713, %v665, 0
        %v852 = vsel %vm713, %v752, 0
        %854 = vmatpush.bf16.xpose.msra.mxu0 0
        %855 = vmatpush.bf16.xpose.msra.mxu0 0
        %856 = vmatpush.bf16.xpose.msra.mxu0 0
        %857 = vmatpush.bf16.xpose.msra.mxu0 0
        %858 = vmatpush.bf16.xpose.msra.mxu0 0
        %859 = vmatpush.bf16.xpose.msra.mxu0 0
        %860 = vmatpush.bf16.xpose.msra.mxu0 0
        %861 = vmatpush.bf16.xpose.msra.mxu0 %v852
        %862 = vmatmul.bf16.gmra.mxu0 %v849
        %v863 = vpop.f32.mrf.mxu0
        %v864 = vadd.f32 0.0, %v863
        %v865 = vpop.f32.mrf.mxu0
        %866 = vdwg.mxu0
        %v867 = vld [vmem:[#allocation10] sm:$0xf]
        %v868 = vld [vmem:[#allocation10 + $0x4] sm:$0xf]
        %v869 = vld [vmem:[#allocation10 + $0x8] sm:$0xf]
        %v870 = vld [vmem:[#allocation10 + $0xc] sm:$0xf]
        %v871 = vld [vmem:[%s6] sm:$0x1]
        %v873 = vperm.slane %v871, 0
        %v881 = vunpack.c.l.b16 %v666
        %v882 = vunpack.c.l.b16 %v667
        %v883 = vunpack.c.l.b16 %v668
        %v884 = vunpack.c.l.b16 %v669
        %v885 = vunpack.c.l.b16 %v670
        %v886 = vunpack.c.l.b16 %v671
        %v887 = vpack.c.b16 %v882, %v881
        %v888 = vpack.c.b16 %v884, %v883
        %v889 = vpack.c.b16 %v886, %v885
        %v894 = vunpack.c.l.b16 %v867
        %v895 = vunpack.c.l.b16 %v868
        %v896 = vunpack.c.l.b16 %v869
        %v897 = vunpack.c.l.b16 %v870
        %v898 = vpack.c.b16 %v895, %v894
        %v899 = vpack.c.b16 %v897, %v896
        %v903 = vsel %vm713, %v887, 0
        %v906 = vsel %vm713, %v888, 0
        %v909 = vsel %vm713, %v889, 0
        %911 = vmatpush.bf16.msra.mxu0 0
        %912 = vmatpush.bf16.msra.mxu0 0
        %913 = vmatpush.bf16.msra.mxu0 0
        %914 = vmatpush.bf16.msra.mxu0 0
        %915 = vmatpush.bf16.msra.mxu0 0
        %916 = vmatpush.bf16.msra.mxu0 0
        %917 = vmatpush.bf16.msra.mxu0 %v899
        %918 = vmatpush.bf16.msra.mxu0 %v898
        %919 = vmatmul.bf16.gmra.mxu0 %v903
        %v920 = vpop.f32.mrf.mxu0
        %v921 = vadd.f32 %v873, %v920
        %v922 = vpop.f32.mrf.mxu0
        %v923 = vadd.f32 %v873, %v922
        %924 = vmatmul.bf16.gmra.mxu0 %v906
        %v925 = vpop.f32.mrf.mxu0
        %v926 = vadd.f32 %v873, %v925
        %v927 = vpop.f32.mrf.mxu0
        %v928 = vadd.f32 %v873, %v927
        %929 = vmatmul.bf16.gmra.mxu0 %v909
        %v930 = vpop.f32.mrf.mxu0
        %v931 = vadd.f32 %v873, %v930
        %v932 = vpop.f32.mrf.mxu0
        %v933 = vadd.f32 %v873, %v932
        %934 = vdwg.mxu0
        %v935 = vpack.c.bf16 %v921, %v921
        %v936 = vpack.c.bf16 %v923, %v923
        %v937 = vpack.c.bf16 %v926, %v926
        %v938 = vpack.c.bf16 %v928, %v928
        %v939 = vpack.c.bf16 %v931, %v931
        %v940 = vpack.c.bf16 %v933, %v933
        %v942 = vsel %vm713, %v935, 0
        %944 = vmatpush.bf16.xpose.msra.mxu0 0
        %945 = vmatpush.bf16.xpose.msra.mxu0 0
        %946 = vmatpush.bf16.xpose.msra.mxu0 0
        %947 = vmatpush.bf16.xpose.msra.mxu0 0
        %948 = vmatpush.bf16.xpose.msra.mxu0 0
        %949 = vmatpush.bf16.xpose.msra.mxu0 0
        %950 = vmatpush.bf16.xpose.msra.mxu0 0
        %951 = vmatpush.bf16.xpose.msra.mxu0 %v942
        %952 = vmatmul.bf16.gmra.mxu0 %v754
        %v953 = vpop.f32.mrf.mxu0
        %v954 = vadd.f32 0.0, %v953
        %v955 = vpop.f32.mrf.mxu0
        %956 = vdwg.mxu0
        %v958 = vsel %vm713, %v936, 0
        %960 = vmatpush.bf16.xpose.msra.mxu0 0
        %961 = vmatpush.bf16.xpose.msra.mxu0 0
        %962 = vmatpush.bf16.xpose.msra.mxu0 0
        %963 = vmatpush.bf16.xpose.msra.mxu0 0
        %964 = vmatpush.bf16.xpose.msra.mxu0 0
        %965 = vmatpush.bf16.xpose.msra.mxu0 0
        %966 = vmatpush.bf16.xpose.msra.mxu0 0
        %967 = vmatpush.bf16.xpose.msra.mxu0 %v958
        %968 = vmatmul.bf16.gmra.mxu0 %v773
        %v969 = vpop.f32.mrf.mxu0
        %v970 = vadd.f32 0.0, %v969
        %v971 = vpop.f32.mrf.mxu0
        %972 = vdwg.mxu0
        %v974 = vsel %vm713, %v937, 0
        %976 = vmatpush.bf16.xpose.msra.mxu0 0
        %977 = vmatpush.bf16.xpose.msra.mxu0 0
        %978 = vmatpush.bf16.xpose.msra.mxu0 0
        %979 = vmatpush.bf16.xpose.msra.mxu0 0
        %980 = vmatpush.bf16.xpose.msra.mxu0 0
        %981 = vmatpush.bf16.xpose.msra.mxu0 0
        %982 = vmatpush.bf16.xpose.msra.mxu0 0
        %983 = vmatpush.bf16.xpose.msra.mxu0 %v974
        %984 = vmatmul.bf16.gmra.mxu0 %v792
        %v985 = vpop.f32.mrf.mxu0
        %v986 = vadd.f32 0.0, %v985
        %v987 = vpop.f32.mrf.mxu0
        %988 = vdwg.mxu0
        %v990 = vsel %vm713, %v938, 0
        %992 = vmatpush.bf16.xpose.msra.mxu0 0
        %993 = vmatpush.bf16.xpose.msra.mxu0 0
        %994 = vmatpush.bf16.xpose.msra.mxu0 0
        %995 = vmatpush.bf16.xpose.msra.mxu0 0
        %996 = vmatpush.bf16.xpose.msra.mxu0 0
        %997 = vmatpush.bf16.xpose.msra.mxu0 0
        %998 = vmatpush.bf16.xpose.msra.mxu0 0
        %999 = vmatpush.bf16.xpose.msra.mxu0 %v990
        %1000 = vmatmul.bf16.gmra.mxu0 %v811
        %v1001 = vpop.f32.mrf.mxu0
        %v1002 = vadd.f32 0.0, %v1001
        %v1003 = vpop.f32.mrf.mxu0
        %1004 = vdwg.mxu0
        %v1006 = vsel %vm713, %v939, 0
        %1008 = vmatpush.bf16.xpose.msra.mxu0 0
        %1009 = vmatpush.bf16.xpose.msra.mxu0 0
        %1010 = vmatpush.bf16.xpose.msra.mxu0 0
        %1011 = vmatpush.bf16.xpose.msra.mxu0 0
        %1012 = vmatpush.bf16.xpose.msra.mxu0 0
        %1013 = vmatpush.bf16.xpose.msra.mxu0 0
        %1014 = vmatpush.bf16.xpose.msra.mxu0 0
        %1015 = vmatpush.bf16.xpose.msra.mxu0 %v1006
        %1016 = vmatmul.bf16.gmra.mxu0 %v830
        %v1017 = vpop.f32.mrf.mxu0
        %v1018 = vadd.f32 0.0, %v1017
        %v1019 = vpop.f32.mrf.mxu0
        %1020 = vdwg.mxu0
        %v1022 = vsel %vm713, %v940, 0
        %1024 = vmatpush.bf16.xpose.msra.mxu0 0
        %1025 = vmatpush.bf16.xpose.msra.mxu0 0
        %1026 = vmatpush.bf16.xpose.msra.mxu0 0
        %1027 = vmatpush.bf16.xpose.msra.mxu0 0
        %1028 = vmatpush.bf16.xpose.msra.mxu0 0
        %1029 = vmatpush.bf16.xpose.msra.mxu0 0
        %1030 = vmatpush.bf16.xpose.msra.mxu0 0
        %1031 = vmatpush.bf16.xpose.msra.mxu0 %v1022
        %1032 = vmatmul.bf16.gmra.mxu0 %v849
        %v1033 = vpop.f32.mrf.mxu0
        %v1034 = vadd.f32 0.0, %v1033
        %v1035 = vpop.f32.mrf.mxu0
        %1036 = vdwg.mxu0
        %vm1037 = vcmask 64512
        %v1038 = vsel %vm1037, %v954, -inf
        %1039 = vmax.xlane.f32.xlu0 %v1038
        %v1040 = vpop.xlane.xlu0 %1039
        %v1041 = vsel %vm1037, %v970, -inf
        %1042 = vmax.xlane.f32.xlu0 %v1041
        %v1043 = vpop.xlane.xlu0 %1042
        %v1044 = vsel %vm1037, %v986, -inf
        %1045 = vmax.xlane.f32.xlu0 %v1044
        %v1046 = vpop.xlane.xlu0 %1045
        %v1047 = vsel %vm1037, %v1002, -inf
        %1048 = vmax.xlane.f32.xlu0 %v1047
        %v1049 = vpop.xlane.xlu0 %1048
        %v1050 = vsel %vm1037, %v1018, -inf
        %1051 = vmax.xlane.f32.xlu0 %v1050
        %v1052 = vpop.xlane.xlu0 %1051
        %v1053 = vsel %vm1037, %v1034, -inf
        %1054 = vmax.xlane.f32.xlu0 %v1053
        %v1055 = vpop.xlane.xlu0 %1054
        %v1056 = vsub.f32 %v954, %v1040
        %v1057 = vsub.f32 %v970, %v1043
        %v1058 = vsub.f32 %v986, %v1046
        %v1059 = vsub.f32 %v1002, %v1049
        %v1060 = vsub.f32 %v1018, %v1052
        %v1061 = vsub.f32 %v1034, %v1055
        %v1062 = vmul.f32 %v1056, 1.442695
        %v1063 = vpow.pop %v1062
        %v1064 = vmul.f32 %v1057, 1.442695
        %v1065 = vpow.pop %v1064
        %v1066 = vmul.f32 %v1058, 1.442695
        %v1067 = vpow.pop %v1066
        %v1068 = vmul.f32 %v1059, 1.442695
        %v1069 = vpow.pop %v1068
        %v1070 = vmul.f32 %v1060, 1.442695
        %v1071 = vpow.pop %v1070
        %v1072 = vmul.f32 %v1061, 1.442695
        %v1073 = vpow.pop %v1072
        %v1074 = vsel %vm1037, %v1063, 0.0
        %1075 = vadd.xlane.f32.xlu0 %v1074
        %v1076 = vpop.xlane.xlu0 %1075
        %v1077 = vsel %vm1037, %v1065, 0.0
        %1078 = vadd.xlane.f32.xlu0 %v1077
        %v1079 = vpop.xlane.xlu0 %1078
        %v1080 = vsel %vm1037, %v1067, 0.0
        %1081 = vadd.xlane.f32.xlu0 %v1080
        %v1082 = vpop.xlane.xlu0 %1081
        %v1083 = vsel %vm1037, %v1069, 0.0
        %1084 = vadd.xlane.f32.xlu0 %v1083
        %v1085 = vpop.xlane.xlu0 %1084
        %v1086 = vsel %vm1037, %v1071, 0.0
        %1087 = vadd.xlane.f32.xlu0 %v1086
        %v1088 = vpop.xlane.xlu0 %1087
        %v1089 = vsel %vm1037, %v1073, 0.0
        %1090 = vadd.xlane.f32.xlu0 %v1089
        %v1091 = vpop.xlane.xlu0 %1090
        %v1092 = vrcp.pop %v1076
        %v1093 = vrcp.pop %v1079
        %v1094 = vrcp.pop %v1082
        %v1095 = vrcp.pop %v1085
        %v1096 = vrcp.pop %v1088
        %v1097 = vrcp.pop %v1091
        %v1098 = vmul.f32 %v1063, %v1092
        %v1099 = vmul.f32 %v1065, %v1093
        %v1100 = vmul.f32 %v1067, %v1094
        %v1101 = vmul.f32 %v1069, %v1095
        %v1102 = vmul.f32 %v1071, %v1096
        %v1103 = vmul.f32 %v1073, %v1097
        %v1104 = vpack.c.bf16 %v1098, %v1098
        %v1105 = vpack.c.bf16 %v1099, %v1099
        %v1106 = vpack.c.bf16 %v1100, %v1100
        %v1107 = vpack.c.bf16 %v1101, %v1101
        %v1108 = vpack.c.bf16 %v1102, %v1102
        %v1109 = vpack.c.bf16 %v1103, %v1103
        %v1111 = vsel %vm1037, %v1104, 0
        %vm1113 = vcmask 1043456
        %v1115 = vsel %vm1113, %v666, 0
        %1117 = vmatpush.bf16.msra.mxu0 0
        %1118 = vmatpush.bf16.msra.mxu0 0
        %1119 = vmatpush.bf16.msra.mxu0 0
        %1120 = vmatpush.bf16.msra.mxu0 0
        %1121 = vmatpush.bf16.msra.mxu0 0
        %1122 = vmatpush.bf16.msra.mxu0 0
        %1123 = vmatpush.bf16.msra.mxu0 0
        %1124 = vmatpush.bf16.msra.mxu0 %v1115
        %1125 = vmatmul.bf16.gmra.mxu0 %v1111
        %v1126 = vpop.f32.mrf.mxu0
        %v1127 = vadd.f32 0.0, %v1126
        %v1128 = vpop.f32.mrf.mxu0
        %1129 = vdwg.mxu0
        %v1131 = vsel %vm1037, %v1105, 0
        %v1134 = vsel %vm1113, %v667, 0
        %1136 = vmatpush.bf16.msra.mxu0 0
        %1137 = vmatpush.bf16.msra.mxu0 0
        %1138 = vmatpush.bf16.msra.mxu0 0
        %1139 = vmatpush.bf16.msra.mxu0 0
        %1140 = vmatpush.bf16.msra.mxu0 0
        %1141 = vmatpush.bf16.msra.mxu0 0
        %1142 = vmatpush.bf16.msra.mxu0 0
        %1143 = vmatpush.bf16.msra.mxu0 %v1134
        %1144 = vmatmul.bf16.gmra.mxu0 %v1131
        %v1145 = vpop.f32.mrf.mxu0
        %v1146 = vadd.f32 0.0, %v1145
        %v1147 = vpop.f32.mrf.mxu0
        %1148 = vdwg.mxu0
        %v1150 = vsel %vm1037, %v1106, 0
        %v1153 = vsel %vm1113, %v668, 0
        %1155 = vmatpush.bf16.msra.mxu0 0
        %1156 = vmatpush.bf16.msra.mxu0 0
        %1157 = vmatpush.bf16.msra.mxu0 0
        %1158 = vmatpush.bf16.msra.mxu0 0
        %1159 = vmatpush.bf16.msra.mxu0 0
        %1160 = vmatpush.bf16.msra.mxu0 0
        %1161 = vmatpush.bf16.msra.mxu0 0
        %1162 = vmatpush.bf16.msra.mxu0 %v1153
        %1163 = vmatmul.bf16.gmra.mxu0 %v1150
        %v1164 = vpop.f32.mrf.mxu0
        %v1165 = vadd.f32 0.0, %v1164
        %v1166 = vpop.f32.mrf.mxu0
        %1167 = vdwg.mxu0
        %v1169 = vsel %vm1037, %v1107, 0
        %v1172 = vsel %vm1113, %v669, 0
        %1174 = vmatpush.bf16.msra.mxu0 0
        %1175 = vmatpush.bf16.msra.mxu0 0
        %1176 = vmatpush.bf16.msra.mxu0 0
        %1177 = vmatpush.bf16.msra.mxu0 0
        %1178 = vmatpush.bf16.msra.mxu0 0
        %1179 = vmatpush.bf16.msra.mxu0 0
        %1180 = vmatpush.bf16.msra.mxu0 0
        %1181 = vmatpush.bf16.msra.mxu0 %v1172
        %1182 = vmatmul.bf16.gmra.mxu0 %v1169
        %v1183 = vpop.f32.mrf.mxu0
        %v1184 = vadd.f32 0.0, %v1183
        %v1185 = vpop.f32.mrf.mxu0
        %1186 = vdwg.mxu0
        %v1188 = vsel %vm1037, %v1108, 0
        %v1191 = vsel %vm1113, %v670, 0
        %1193 = vmatpush.bf16.msra.mxu0 0
        %1194 = vmatpush.bf16.msra.mxu0 0
        %1195 = vmatpush.bf16.msra.mxu0 0
        %1196 = vmatpush.bf16.msra.mxu0 0
        %1197 = vmatpush.bf16.msra.mxu0 0
        %1198 = vmatpush.bf16.msra.mxu0 0
        %1199 = vmatpush.bf16.msra.mxu0 0
        %1200 = vmatpush.bf16.msra.mxu0 %v1191
        %1201 = vmatmul.bf16.gmra.mxu0 %v1188
        %v1202 = vpop.f32.mrf.mxu0
        %v1203 = vadd.f32 0.0, %v1202
        %v1204 = vpop.f32.mrf.mxu0
        %1205 = vdwg.mxu0
        %v1207 = vsel %vm1037, %v1109, 0
        %v1210 = vsel %vm1113, %v671, 0
        %1212 = vmatpush.bf16.msra.mxu0 0
        %1213 = vmatpush.bf16.msra.mxu0 0
        %1214 = vmatpush.bf16.msra.mxu0 0
        %1215 = vmatpush.bf16.msra.mxu0 0
        %1216 = vmatpush.bf16.msra.mxu0 0
        %1217 = vmatpush.bf16.msra.mxu0 0
        %1218 = vmatpush.bf16.msra.mxu0 0
        %1219 = vmatpush.bf16.msra.mxu0 %v1210
        %1220 = vmatmul.bf16.gmra.mxu0 %v1207
        %v1221 = vpop.f32.mrf.mxu0
        %v1222 = vadd.f32 0.0, %v1221
        %v1223 = vpop.f32.mrf.mxu0
        %1224 = vdwg.mxu0
        %v1225 = vld [vmem:[#allocation11] sm:$0xf]
        %v1226 = vld [vmem:[#allocation11 + $0x4] sm:$0xf]
        %v1227 = vld [vmem:[#allocation11 + $0x8] sm:$0xf]
        %v1228 = vld [vmem:[#allocation11 + $0xc] sm:$0xf]
        %v1229 = vld [vmem:[%s8] sm:$0x1]
        %v1231 = vperm.slane %v1229, 0
        %v1237 = vunpack.c.l.b16 %v1225
        %v1238 = vunpack.c.l.b16 %v1226
        %v1239 = vunpack.c.l.b16 %v1227
        %v1240 = vunpack.c.l.b16 %v1228
        %v1241 = vpack.c.b16 %v1238, %v1237
        %v1242 = vpack.c.b16 %v1240, %v1239
        %1245 = vmatpush.bf16.msra.mxu0 0
        %1246 = vmatpush.bf16.msra.mxu0 0
        %1247 = vmatpush.bf16.msra.mxu0 0
        %1248 = vmatpush.bf16.msra.mxu0 0
        %1249 = vmatpush.bf16.msra.mxu0 0
        %1250 = vmatpush.bf16.msra.mxu0 0
        %1251 = vmatpush.bf16.msra.mxu0 %v1242
        %1252 = vmatpush.bf16.msra.mxu0 %v1241
        %1253 = vmatmul.bf16.gmra.mxu0 %v715
        %v1254 = vpop.f32.mrf.mxu0
        %v1255 = vadd.f32 %v1231, %v1254
        %v1256 = vpop.f32.mrf.mxu0
        %v1257 = vadd.f32 %v1231, %v1256
        %1258 = vmatmul.bf16.gmra.mxu0 %v718
        %v1259 = vpop.f32.mrf.mxu0
        %v1260 = vadd.f32 %v1231, %v1259
        %v1261 = vpop.f32.mrf.mxu0
        %v1262 = vadd.f32 %v1231, %v1261
        %1263 = vmatmul.bf16.gmra.mxu0 %v721
        %v1264 = vpop.f32.mrf.mxu0
        %v1265 = vadd.f32 %v1231, %v1264
        %v1266 = vpop.f32.mrf.mxu0
        %v1267 = vadd.f32 %v1231, %v1266
        %1268 = vdwg.mxu0
        %v1269 = vpack.c.bf16 %v1255, %v1255
        %v1270 = vpack.c.bf16 %v1257, %v1257
        %v1271 = vpack.c.bf16 %v1260, %v1260
        %v1272 = vpack.c.bf16 %v1262, %v1262
        %v1273 = vpack.c.bf16 %v1265, %v1265
        %v1274 = vpack.c.bf16 %v1267, %v1267
        %v1276 = vsel %vm713, %v1269, 0
        %1278 = vmatpush.bf16.xpose.msra.mxu0 0
        %1279 = vmatpush.bf16.xpose.msra.mxu0 0
        %1280 = vmatpush.bf16.xpose.msra.mxu0 0
        %1281 = vmatpush.bf16.xpose.msra.mxu0 0
        %1282 = vmatpush.bf16.xpose.msra.mxu0 0
        %1283 = vmatpush.bf16.xpose.msra.mxu0 0
        %1284 = vmatpush.bf16.xpose.msra.mxu0 0
        %1285 = vmatpush.bf16.xpose.msra.mxu0 %v1276
        %1286 = vmatmul.bf16.gmra.mxu0 %v754
        %v1287 = vpop.f32.mrf.mxu0
        %v1288 = vadd.f32 0.0, %v1287
        %v1289 = vpop.f32.mrf.mxu0
        %1290 = vdwg.mxu0
        %v1292 = vsel %vm713, %v1270, 0
        %1294 = vmatpush.bf16.xpose.msra.mxu0 0
        %1295 = vmatpush.bf16.xpose.msra.mxu0 0
        %1296 = vmatpush.bf16.xpose.msra.mxu0 0
        %1297 = vmatpush.bf16.xpose.msra.mxu0 0
        %1298 = vmatpush.bf16.xpose.msra.mxu0 0
        %1299 = vmatpush.bf16.xpose.msra.mxu0 0
        %1300 = vmatpush.bf16.xpose.msra.mxu0 0
        %1301 = vmatpush.bf16.xpose.msra.mxu0 %v1292
        %1302 = vmatmul.bf16.gmra.mxu0 %v773
        %v1303 = vpop.f32.mrf.mxu0
        %v1304 = vadd.f32 0.0, %v1303
        %v1305 = vpop.f32.mrf.mxu0
        %1306 = vdwg.mxu0
        %v1308 = vsel %vm713, %v1271, 0
        %1310 = vmatpush.bf16.xpose.msra.mxu0 0
        %1311 = vmatpush.bf16.xpose.msra.mxu0 0
        %1312 = vmatpush.bf16.xpose.msra.mxu0 0
        %1313 = vmatpush.bf16.xpose.msra.mxu0 0
        %1314 = vmatpush.bf16.xpose.msra.mxu0 0
        %1315 = vmatpush.bf16.xpose.msra.mxu0 0
        %1316 = vmatpush.bf16.xpose.msra.mxu0 0
        %1317 = vmatpush.bf16.xpose.msra.mxu0 %v1308
        %1318 = vmatmul.bf16.gmra.mxu0 %v792
        %v1319 = vpop.f32.mrf.mxu0
        %v1320 = vadd.f32 0.0, %v1319
        %v1321 = vpop.f32.mrf.mxu0
        %1322 = vdwg.mxu0
        %v1324 = vsel %vm713, %v1272, 0
        %1326 = vmatpush.bf16.xpose.msra.mxu0 0
        %1327 = vmatpush.bf16.xpose.msra.mxu0 0
        %1328 = vmatpush.bf16.xpose.msra.mxu0 0
        %1329 = vmatpush.bf16.xpose.msra.mxu0 0
        %1330 = vmatpush.bf16.xpose.msra.mxu0 0
        %1331 = vmatpush.bf16.xpose.msra.mxu0 0
        %1332 = vmatpush.bf16.xpose.msra.mxu0 0
        %1333 = vmatpush.bf16.xpose.msra.mxu0 %v1324
        %1334 = vmatmul.bf16.gmra.mxu0 %v811
        %v1335 = vpop.f32.mrf.mxu0
        %v1336 = vadd.f32 0.0, %v1335
        %v1337 = vpop.f32.mrf.mxu0
        %1338 = vdwg.mxu0
        %v1340 = vsel %vm713, %v1273, 0
        %1342 = vmatpush.bf16.xpose.msra.mxu0 0
        %1343 = vmatpush.bf16.xpose.msra.mxu0 0
        %1344 = vmatpush.bf16.xpose.msra.mxu0 0
        %1345 = vmatpush.bf16.xpose.msra.mxu0 0
        %1346 = vmatpush.bf16.xpose.msra.mxu0 0
        %1347 = vmatpush.bf16.xpose.msra.mxu0 0
        %1348 = vmatpush.bf16.xpose.msra.mxu0 0
        %1349 = vmatpush.bf16.xpose.msra.mxu0 %v1340
        %1350 = vmatmul.bf16.gmra.mxu0 %v830
        %v1351 = vpop.f32.mrf.mxu0
        %v1352 = vadd.f32 0.0, %v1351
        %v1353 = vpop.f32.mrf.mxu0
        %1354 = vdwg.mxu0
        %v1356 = vsel %vm713, %v1274, 0
        %1358 = vmatpush.bf16.xpose.msra.mxu0 0
        %1359 = vmatpush.bf16.xpose.msra.mxu0 0
        %1360 = vmatpush.bf16.xpose.msra.mxu0 0
        %1361 = vmatpush.bf16.xpose.msra.mxu0 0
        %1362 = vmatpush.bf16.xpose.msra.mxu0 0
        %1363 = vmatpush.bf16.xpose.msra.mxu0 0
        %1364 = vmatpush.bf16.xpose.msra.mxu0 0
        %1365 = vmatpush.bf16.xpose.msra.mxu0 %v1356
        %1366 = vmatmul.bf16.gmra.mxu0 %v849
        %v1367 = vpop.f32.mrf.mxu0
        %v1368 = vadd.f32 0.0, %v1367
        %v1369 = vpop.f32.mrf.mxu0
        %1370 = vdwg.mxu0
        %v1371 = vsel %vm1037, %v1288, -inf
        %1372 = vmax.xlane.f32.xlu0 %v1371
        %v1373 = vpop.xlane.xlu0 %1372
        %v1374 = vsel %vm1037, %v1304, -inf
        %1375 = vmax.xlane.f32.xlu0 %v1374
        %v1376 = vpop.xlane.xlu0 %1375
        %v1377 = vsel %vm1037, %v1320, -inf
        %1378 = vmax.xlane.f32.xlu0 %v1377
        %v1379 = vpop.xlane.xlu0 %1378
        %v1380 = vsel %vm1037, %v1336, -inf
        %1381 = vmax.xlane.f32.xlu0 %v1380
        %v1382 = vpop.xlane.xlu0 %1381
        %v1383 = vsel %vm1037, %v1352, -inf
        %1384 = vmax.xlane.f32.xlu0 %v1383
        %v1385 = vpop.xlane.xlu0 %1384
        %v1386 = vsel %vm1037, %v1368, -inf
        %1387 = vmax.xlane.f32.xlu0 %v1386
        %v1388 = vpop.xlane.xlu0 %1387
        %v1389 = vsub.f32 %v1288, %v1373
        %v1390 = vsub.f32 %v1304, %v1376
        %v1391 = vsub.f32 %v1320, %v1379
        %v1392 = vsub.f32 %v1336, %v1382
        %v1393 = vsub.f32 %v1352, %v1385
        %v1394 = vsub.f32 %v1368, %v1388
        %v1395 = vmul.f32 %v1389, 1.442695
        %v1396 = vpow.pop %v1395
        %v1397 = vmul.f32 %v1390, 1.442695
        %v1398 = vpow.pop %v1397
        %v1399 = vmul.f32 %v1391, 1.442695
        %v1400 = vpow.pop %v1399
        %v1401 = vmul.f32 %v1392, 1.442695
        %v1402 = vpow.pop %v1401
        %v1403 = vmul.f32 %v1393, 1.442695
        %v1404 = vpow.pop %v1403
        %v1405 = vmul.f32 %v1394, 1.442695
        %v1406 = vpow.pop %v1405
        %v1407 = vsel %vm1037, %v1396, 0.0
        %1408 = vadd.xlane.f32.xlu0 %v1407
        %v1409 = vpop.xlane.xlu0 %1408
        %v1410 = vsel %vm1037, %v1398, 0.0
        %1411 = vadd.xlane.f32.xlu0 %v1410
        %v1412 = vpop.xlane.xlu0 %1411
        %v1413 = vsel %vm1037, %v1400, 0.0
        %1414 = vadd.xlane.f32.xlu0 %v1413
        %v1415 = vpop.xlane.xlu0 %1414
        %v1416 = vsel %vm1037, %v1402, 0.0
        %1417 = vadd.xlane.f32.xlu0 %v1416
        %v1418 = vpop.xlane.xlu0 %1417
        %v1419 = vsel %vm1037, %v1404, 0.0
        %1420 = vadd.xlane.f32.xlu0 %v1419
        %v1421 = vpop.xlane.xlu0 %1420
        %v1422 = vsel %vm1037, %v1406, 0.0
        %1423 = vadd.xlane.f32.xlu0 %v1422
        %v1424 = vpop.xlane.xlu0 %1423
        %v1425 = vrcp.pop %v1409
        %v1426 = vrcp.pop %v1412
        %v1427 = vrcp.pop %v1415
        %v1428 = vrcp.pop %v1418
        %v1429 = vrcp.pop %v1421
        %v1430 = vrcp.pop %v1424
        %v1431 = vmul.f32 %v1396, %v1425
        %v1432 = vmul.f32 %v1398, %v1426
        %v1433 = vmul.f32 %v1400, %v1427
        %v1434 = vmul.f32 %v1402, %v1428
        %v1435 = vmul.f32 %v1404, %v1429
        %v1436 = vmul.f32 %v1406, %v1430
        %v1437 = vpack.c.bf16 %v1431, %v1431
        %v1438 = vpack.c.bf16 %v1432, %v1432
        %v1439 = vpack.c.bf16 %v1433, %v1433
        %v1440 = vpack.c.bf16 %v1434, %v1434
        %v1441 = vpack.c.bf16 %v1435, %v1435
        %v1442 = vpack.c.bf16 %v1436, %v1436
        %v1444 = vsel %vm1037, %v1437, 0
        %v1447 = vsel %vm1113, %v672, 0
        %1449 = vmatpush.bf16.msra.mxu0 0
        %1450 = vmatpush.bf16.msra.mxu0 0
        %1451 = vmatpush.bf16.msra.mxu0 0
        %1452 = vmatpush.bf16.msra.mxu0 0
        %1453 = vmatpush.bf16.msra.mxu0 0
        %1454 = vmatpush.bf16.msra.mxu0 0
        %1455 = vmatpush.bf16.msra.mxu0 0
        %1456 = vmatpush.bf16.msra.mxu0 %v1447
        %1457 = vmatmul.bf16.gmra.mxu0 %v1444
        %v1458 = vpop.f32.mrf.mxu0
        %v1459 = vadd.f32 0.0, %v1458
        %v1460 = vpop.f32.mrf.mxu0
        %1461 = vdwg.mxu0
        %v1463 = vsel %vm1037, %v1438, 0
        %v1466 = vsel %vm1113, %v673, 0
        %1468 = vmatpush.bf16.msra.mxu0 0
        %1469 = vmatpush.bf16.msra.mxu0 0
        %1470 = vmatpush.bf16.msra.mxu0 0
        %1471 = vmatpush.bf16.msra.mxu0 0
        %1472 = vmatpush.bf16.msra.mxu0 0
        %1473 = vmatpush.bf16.msra.mxu0 0
        %1474 = vmatpush.bf16.msra.mxu0 0
        %1475 = vmatpush.bf16.msra.mxu0 %v1466
        %1476 = vmatmul.bf16.gmra.mxu0 %v1463
        %v1477 = vpop.f32.mrf.mxu0
        %v1478 = vadd.f32 0.0, %v1477
        %v1479 = vpop.f32.mrf.mxu0
        %1480 = vdwg.mxu0
        %v1482 = vsel %vm1037, %v1439, 0
        %v1485 = vsel %vm1113, %v674, 0
        %1487 = vmatpush.bf16.msra.mxu0 0
        %1488 = vmatpush.bf16.msra.mxu0 0
        %1489 = vmatpush.bf16.msra.mxu0 0
        %1490 = vmatpush.bf16.msra.mxu0 0
        %1491 = vmatpush.bf16.msra.mxu0 0
        %1492 = vmatpush.bf16.msra.mxu0 0
        %1493 = vmatpush.bf16.msra.mxu0 0
        %1494 = vmatpush.bf16.msra.mxu0 %v1485
        %1495 = vmatmul.bf16.gmra.mxu0 %v1482
        %v1496 = vpop.f32.mrf.mxu0
        %v1497 = vadd.f32 0.0, %v1496
        %v1498 = vpop.f32.mrf.mxu0
        %1499 = vdwg.mxu0
        %v1501 = vsel %vm1037, %v1440, 0
        %v1504 = vsel %vm1113, %v675, 0
        %1506 = vmatpush.bf16.msra.mxu0 0
        %1507 = vmatpush.bf16.msra.mxu0 0
        %1508 = vmatpush.bf16.msra.mxu0 0
        %1509 = vmatpush.bf16.msra.mxu0 0
        %1510 = vmatpush.bf16.msra.mxu0 0
        %1511 = vmatpush.bf16.msra.mxu0 0
        %1512 = vmatpush.bf16.msra.mxu0 0
        %1513 = vmatpush.bf16.msra.mxu0 %v1504
        %1514 = vmatmul.bf16.gmra.mxu0 %v1501
        %v1515 = vpop.f32.mrf.mxu0
        %v1516 = vadd.f32 0.0, %v1515
        %v1517 = vpop.f32.mrf.mxu0
        %1518 = vdwg.mxu0
        %v1520 = vsel %vm1037, %v1441, 0
        %v1523 = vsel %vm1113, %v676, 0
        %1525 = vmatpush.bf16.msra.mxu0 0
        %1526 = vmatpush.bf16.msra.mxu0 0
        %1527 = vmatpush.bf16.msra.mxu0 0
        %1528 = vmatpush.bf16.msra.mxu0 0
        %1529 = vmatpush.bf16.msra.mxu0 0
        %1530 = vmatpush.bf16.msra.mxu0 0
        %1531 = vmatpush.bf16.msra.mxu0 0
        %1532 = vmatpush.bf16.msra.mxu0 %v1523
        %1533 = vmatmul.bf16.gmra.mxu0 %v1520
        %v1534 = vpop.f32.mrf.mxu0
        %v1535 = vadd.f32 0.0, %v1534
        %v1536 = vpop.f32.mrf.mxu0
        %1537 = vdwg.mxu0
        %v1539 = vsel %vm1037, %v1442, 0
        %v1542 = vsel %vm1113, %v677, 0
        %1544 = vmatpush.bf16.msra.mxu0 0
        %1545 = vmatpush.bf16.msra.mxu0 0
        %1546 = vmatpush.bf16.msra.mxu0 0
        %1547 = vmatpush.bf16.msra.mxu0 0
        %1548 = vmatpush.bf16.msra.mxu0 0
        %1549 = vmatpush.bf16.msra.mxu0 0
        %1550 = vmatpush.bf16.msra.mxu0 0
        %1551 = vmatpush.bf16.msra.mxu0 %v1542
        %1552 = vmatmul.bf16.gmra.mxu0 %v1539
        %v1553 = vpop.f32.mrf.mxu0
        %v1554 = vadd.f32 0.0, %v1553
        %v1555 = vpop.f32.mrf.mxu0
        %1556 = vdwg.mxu0
        %v1557 = vld [vmem:[#allocation13] sm:$0xf]
        %v1558 = vld [vmem:[#allocation13 + $0x4] sm:$0xf]
        %v1559 = vld [vmem:[#allocation13 + $0x8] sm:$0xf]
        %v1560 = vld [vmem:[#allocation13 + $0xc] sm:$0xf]
        %v1561 = vpack.c.bf16 %v788, %v769
        %v1562 = vpack.c.bf16 %v826, %v807
        %v1563 = vpack.c.bf16 %v864, %v845
        %v1564 = vld [vmem:[%s10] sm:$0xf]
        %v1566 = vsel %vm1037, %v1561, 0
        %v1569 = vsel %vm1037, %v1562, 0
        %v1572 = vsel %vm1037, %v1563, 0
        %v1575 = vsel %vm1113, %v1564, 0
        %1577 = vmatpush.bf16.msra.mxu0 0
        %1578 = vmatpush.bf16.msra.mxu0 0
        %1579 = vmatpush.bf16.msra.mxu0 0
        %1580 = vmatpush.bf16.msra.mxu0 0
        %1581 = vmatpush.bf16.msra.mxu0 0
        %1582 = vmatpush.bf16.msra.mxu0 0
        %1583 = vmatpush.bf16.msra.mxu0 0
        %1584 = vmatpush.bf16.msra.mxu0 %v1575
        %1585 = vmatmul.bf16.gmra.mxu0 %v1566
        %v1586 = vpop.f32.mrf.mxu0
        %v1587 = vadd.f32 0.0, %v1586
        %v1588 = vpop.f32.mrf.mxu0
        %v1589 = vadd.f32 0.0, %v1588
        %1590 = vmatmul.bf16.gmra.mxu0 %v1569
        %v1591 = vpop.f32.mrf.mxu0
        %v1592 = vadd.f32 0.0, %v1591
        %v1593 = vpop.f32.mrf.mxu0
        %v1594 = vadd.f32 0.0, %v1593
        %1595 = vmatmul.bf16.gmra.mxu0 %v1572
        %v1596 = vpop.f32.mrf.mxu0
        %v1597 = vadd.f32 0.0, %v1596
        %v1598 = vpop.f32.mrf.mxu0
        %v1599 = vadd.f32 0.0, %v1598
        %1600 = vdwg.mxu0
        %v1607 = vunpack.c.l.b16 %v660
        %v1608 = vunpack.c.l.b16 %v661
        %v1609 = vunpack.c.l.b16 %v662
        %v1610 = vunpack.c.l.b16 %v663
        %v1611 = vunpack.c.l.b16 %v664
        %v1612 = vunpack.c.l.b16 %v665
        %v1613 = vpack.c.b16 %v1608, %v1607
        %v1614 = vpack.c.b16 %v1610, %v1609
        %v1615 = vpack.c.b16 %v1612, %v1611
        %v1620 = vunpack.c.l.b16 %v1557
        %v1621 = vunpack.c.l.b16 %v1558
        %v1622 = vunpack.c.l.b16 %v1559
        %v1623 = vunpack.c.l.b16 %v1560
        %v1624 = vpack.c.b16 %v1621, %v1620
        %v1625 = vpack.c.b16 %v1623, %v1622
        %v1629 = vsel %vm713, %v1613, 0
        %v1632 = vsel %vm713, %v1614, 0
        %v1635 = vsel %vm713, %v1615, 0
        %1637 = vmatpush.bf16.msra.mxu0 0
        %1638 = vmatpush.bf16.msra.mxu0 0
        %1639 = vmatpush.bf16.msra.mxu0 0
        %1640 = vmatpush.bf16.msra.mxu0 0
        %1641 = vmatpush.bf16.msra.mxu0 0
        %1642 = vmatpush.bf16.msra.mxu0 0
        %1643 = vmatpush.bf16.msra.mxu0 %v1625
        %1644 = vmatpush.bf16.msra.mxu0 %v1624
        %1645 = vmatmul.bf16.gmra.mxu0 %v1629
        %v1646 = vpop.f32.mrf.mxu0
        %v1647 = vadd.f32 %v1587, %v1646
        %v1648 = vpop.f32.mrf.mxu0
        %v1649 = vadd.f32 %v1589, %v1648
        %1650 = vmatmul.bf16.gmra.mxu0 %v1632
        %v1651 = vpop.f32.mrf.mxu0
        %v1652 = vadd.f32 %v1592, %v1651
        %v1653 = vpop.f32.mrf.mxu0
        %v1654 = vadd.f32 %v1594, %v1653
        %1655 = vmatmul.bf16.gmra.mxu0 %v1635
        %v1656 = vpop.f32.mrf.mxu0
        %v1657 = vadd.f32 %v1597, %v1656
        %v1658 = vpop.f32.mrf.mxu0
        %v1659 = vadd.f32 %v1599, %v1658
        %1660 = vdwg.mxu0
        %v1661 = vpack.c.bf16 %v1146, %v1127
        %v1662 = vpack.c.bf16 %v1184, %v1165
        %v1663 = vpack.c.bf16 %v1222, %v1203
        %v1664 = vld [vmem:[#allocation14] sm:$0xf]
        %v1665 = vld [vmem:[#allocation14 + $0x4] sm:$0xf]
        %v1666 = vld [vmem:[#allocation14 + $0x8] sm:$0xf]
        %v1667 = vld [vmem:[#allocation14 + $0xc] sm:$0xf]
        %v1672 = vunpack.c.l.b16 %v1664
        %v1673 = vunpack.c.l.b16 %v1665
        %v1674 = vunpack.c.l.b16 %v1666
        %v1675 = vunpack.c.l.b16 %v1667
        %v1676 = vpack.c.b16 %v1673, %v1672
        %v1677 = vpack.c.b16 %v1675, %v1674
        %v1681 = vsel %vm713, %v1661, 0
        %v1684 = vsel %vm713, %v1662, 0
        %v1687 = vsel %vm713, %v1663, 0
        %1689 = vmatpush.bf16.msra.mxu0 0
        %1690 = vmatpush.bf16.msra.mxu0 0
        %1691 = vmatpush.bf16.msra.mxu0 0
        %1692 = vmatpush.bf16.msra.mxu0 0
        %1693 = vmatpush.bf16.msra.mxu0 0
        %1694 = vmatpush.bf16.msra.mxu0 0
        %1695 = vmatpush.bf16.msra.mxu0 %v1677
        %1696 = vmatpush.bf16.msra.mxu0 %v1676
        %1697 = vmatmul.bf16.gmra.mxu0 %v1681
        %v1698 = vpop.f32.mrf.mxu0
        %v1699 = vadd.f32 0.0, %v1698
        %v1700 = vpop.f32.mrf.mxu0
        %v1701 = vadd.f32 0.0, %v1700
        %1702 = vmatmul.bf16.gmra.mxu0 %v1684
        %v1703 = vpop.f32.mrf.mxu0
        %v1704 = vadd.f32 0.0, %v1703
        %v1705 = vpop.f32.mrf.mxu0
        %v1706 = vadd.f32 0.0, %v1705
        %1707 = vmatmul.bf16.gmra.mxu0 %v1687
        %v1708 = vpop.f32.mrf.mxu0
        %v1709 = vadd.f32 0.0, %v1708
        %v1710 = vpop.f32.mrf.mxu0
        %v1711 = vadd.f32 0.0, %v1710
        %1712 = vdwg.mxu0
        %v1713 = vadd.f32 %v1647, %v1699
        %v1714 = vadd.f32 %v1649, %v1701
        %v1715 = vadd.f32 %v1652, %v1704
        %v1716 = vadd.f32 %v1654, %v1706
        %v1717 = vadd.f32 %v1657, %v1709
        %v1718 = vadd.f32 %v1659, %v1711
        %v1719 = vpack.c.bf16 %v1478, %v1459
        %v1720 = vpack.c.bf16 %v1516, %v1497
        %v1721 = vpack.c.bf16 %v1554, %v1535
        %v1722 = vld [vmem:[#allocation16] sm:$0xf]
        %v1723 = vld [vmem:[#allocation16 + $0x4] sm:$0xf]
        %v1724 = vld [vmem:[#allocation16 + $0x8] sm:$0xf]
        %v1725 = vld [vmem:[#allocation16 + $0xc] sm:$0xf]
        %v1730 = vunpack.c.l.b16 %v1722
        %v1731 = vunpack.c.l.b16 %v1723
        %v1732 = vunpack.c.l.b16 %v1724
        %v1733 = vunpack.c.l.b16 %v1725
        %v1734 = vpack.c.b16 %v1731, %v1730
        %v1735 = vpack.c.b16 %v1733, %v1732
        %v1739 = vsel %vm713, %v1719, 0
        %v1742 = vsel %vm713, %v1720, 0
        %v1745 = vsel %vm713, %v1721, 0
        %1747 = vmatpush.bf16.msra.mxu0 0
        %1748 = vmatpush.bf16.msra.mxu0 0
        %1749 = vmatpush.bf16.msra.mxu0 0
        %1750 = vmatpush.bf16.msra.mxu0 0
        %1751 = vmatpush.bf16.msra.mxu0 0
        %1752 = vmatpush.bf16.msra.mxu0 0
        %1753 = vmatpush.bf16.msra.mxu0 %v1735
        %1754 = vmatpush.bf16.msra.mxu0 %v1734
        %1755 = vmatmul.bf16.gmra.mxu0 %v1739
        %v1756 = vpop.f32.mrf.mxu0
        %v1757 = vadd.f32 0.0, %v1756
        %v1758 = vpop.f32.mrf.mxu0
        %v1759 = vadd.f32 0.0, %v1758
        %1760 = vmatmul.bf16.gmra.mxu0 %v1742
        %v1761 = vpop.f32.mrf.mxu0
        %v1762 = vadd.f32 0.0, %v1761
        %v1763 = vpop.f32.mrf.mxu0
        %v1764 = vadd.f32 0.0, %v1763
        %1765 = vmatmul.bf16.gmra.mxu0 %v1745
        %v1766 = vpop.f32.mrf.mxu0
        %v1767 = vadd.f32 0.0, %v1766
        %v1768 = vpop.f32.mrf.mxu0
        %v1769 = vadd.f32 0.0, %v1768
        %1770 = vdwg.mxu0
        %v1771 = vadd.f32 %v1713, %v1757
        %v1772 = vadd.f32 %v1714, %v1759
        %v1773 = vadd.f32 %v1715, %v1762
        %v1774 = vadd.f32 %v1716, %v1764
        %v1775 = vadd.f32 %v1717, %v1767
        %v1776 = vadd.f32 %v1718, %v1769
        %v1777 = vld [vmem:[%s13] sm:$0x1]
        %v1779 = vperm.slane %v1777, 0
        %v1781 = vadd.f32 %v1771, %v1779
        %v1782 = vadd.f32 %v1772, %v1779
        %v1783 = vadd.f32 %v1773, %v1779
        %v1784 = vadd.f32 %v1774, %v1779
        %v1785 = vadd.f32 %v1775, %v1779
        %v1786 = vadd.f32 %v1776, %v1779
        %v1787 = vmax.f32 %v1781, 0.0
        %v1788 = vmax.f32 %v1782, 0.0
        %v1789 = vmax.f32 %v1783, 0.0
        %v1790 = vmax.f32 %v1784, 0.0
        %v1791 = vmax.f32 %v1785, 0.0
        %v1792 = vmax.f32 %v1786, 0.0
        %1793 = vst [vmem:[%s652] sm:$0xff] %v1787
        %1794 = vst [vmem:[%s652 + $0x8] sm:$0xff] %v1788
        %1795 = vst [vmem:[%s652 + $0x10] sm:$0xff] %v1789
        %1796 = vst [vmem:[%s652 + $0x18] sm:$0xff] %v1790
        %1797 = vst [vmem:[%s652 + $0x20] sm:$0xff] %v1791
        %1798 = vst [vmem:[%s652 + $0x28] sm:$0xff] %v1792
        %s1799 = sand.u32 %s368, 1
        %s1800 = scalar_lea.sflag [#allocation4], %s1799
        %s1801 = sand.u32 %s368, 1
        %s1802 = smul.addr %s1801, 48
        %s1803 = scalar_lea.vmem [#allocation17], %s1802
        // Predicated region
        $region113: #{tpu_custom_call.1} parent=75 // pred_check
          %p1804 = pneg %p378
        $region114: #{tpu_custom_call.1} parent=75 // pred_check_branch
          %1806 = sbr.rel (%p1804) target = $region116
        $region115: #{tpu_custom_call.1} parent=75 // pred_region
          %s1807 = sadd.s32 %s40, %s39
          %s1808 = smul.u32 6, %s1807
          %1810 = vsyncadd %s1800, 0
          %s1811 = smul.addr %s1808, 8
          %s1812 = scalar_lea.hbm %s14, %s1811
          %s1813 = sshll.u32 %s1803, 4
          %s1814 = int_to_ptr.vmem [resolvable:$true] %s1813
          %s1815 = sshll.u32 %s1812, 4
          %s1816 = int_to_ptr.hbm [resolvable:$true] %s1815
          %1821 = dma.vmem_to_hbm [thread:$0]  %s1814, 768, %s1816, %s1800, 128, 128, 8
        $region116: #{tpu_custom_call.1} parent=75 // pred_fallthru
          _
      $region76: #{tpu_custom_call.1} parent=5 // pred_fallthru
        _
      %p1822 = scmp.le.s32.totalorder 2, %s30
      // Predicated region
      $region117: #{tpu_custom_call.1} parent=5 // pred_check
        %p1823 = pneg %p1822
      $region118: #{tpu_custom_call.1} parent=5 // pred_check_branch
        %1825 = sbr.rel (%p1823) target = $region120
      $region119: #{tpu_custom_call.1} parent=5 // pred_region
        %s1826 = ssub.s32 %s30, 2
        // Predicated region
        $region121: #{tpu_custom_call.1} parent=119 // pred_check
          %p1827 = pneg %p384
        $region122: #{tpu_custom_call.1} parent=119 // pred_check_branch
          %1829 = sbr.rel (%p1827) target = $region124
        $region123: #{tpu_custom_call.1} parent=119 // pred_region
          %s1830 = sand.u32 %s369, 1
          %s1831 = scalar_lea.sflag [#allocation4], %s1830
          %s1832 = sand.u32 %s369, 1
          %s1833 = smul.addr %s1832, 48
          %s1834 = scalar_lea.vmem [#allocation17], %s1833
          %1836 = dma.done %s1831, 768
        $region124: #{tpu_custom_call.1} parent=119 // pred_fallthru
          _
      $region120: #{tpu_custom_call.1} parent=5 // pred_fallthru
        _
    $region6: #{tpu_custom_call.1} parent=1 // loop_footer
      %s34 = sadd.s32 1, %s30
    $region7: #{tpu_custom_call.1} parent=1 // loop_footer_branch
      %29 = sbr.rel target = $region3
    $region8: #{tpu_custom_call.1} parent=1 // loop_exit
      _
    %1837 = vsyncpa [#allocation3], 1
    %s1838 = scalar_lea.sflag [#allocation3], 1
    %1839 = vsyncpa %s1838, 1
    %1840 = vsyncpa [#allocation6], 1
    %1841 = vsyncpa [#allocation9], 1
    %1842 = vsyncpa [#allocation12], 1
    %1843 = vsyncpa [#allocation15], 1
    %1844 = vsyncpa [#allocation4], 1
    %s1845 = scalar_lea.sflag [#allocation4], 1
    %1846 = vsyncpa %s1845, 1

</llo_original>
